<compile_context>
chip_gen: v5e
topology: v5e:2x2
jax: 0.10.0
libtpu: 0.0.40
codegen_flags: <defaults>
</compile_context>

<pallas_src>
import jax
import jax.numpy as jnp
from jax.experimental import pallas as pl
from jax.experimental.pallas import tpu as pltpu

PAD = 8  # row offset of the layer input inside the slab scratches (keeps the big stores aligned)


# ------------------------------- fused kernel --------------------------------

def _store_slab(slab_ref, x, n_in, cin):
    """Write layer input x (n_in, cin) into the pre-shifted slab scratch.

    Tap k lands in lane block [k*cin:(k+1)*cin], shifted by (k-1) rows so that
      slab[PAD + l, k*cin + ci] == x[l + k - 1, ci]
    Rows that are never written stay zero and provide the conv padding.
    """
    for k in range(3):
        r0 = PAD + 1 - k
        slab_ref[r0:r0 + n_in, k * cin:(k + 1) * cin] = x


def _conv_relu_pool(slab_ref, n_out, w, b_row):
    """Conv1d(k=3, s=1, p=1) + ReLU + MaxPool1d(2, 2) from a pre-shifted slab.

    Conv output row l is slab row (PAD + l) dotted with the flattened (3*Cin, Cout) weight.
    Pool output t = max(conv[2t], conv[2t+1]) -> two strided-row matmuls + elementwise max.
    """
    even = slab_ref[pl.ds(PAD, n_out, stride=2), :]        # windows of conv rows 2t
    odd = slab_ref[pl.ds(PAD + 1, n_out, stride=2), :]     # windows of conv rows 2t+1
    he = jnp.dot(even, w, preferred_element_type=jnp.float32)
    ho = jnp.dot(odd, w, preferred_element_type=jnp.float32)
    # max(relu(a + b), relu(c + b)) == relu(max(a, c) + b)
    return jnp.maximum(jnp.maximum(he, ho) + b_row, 0.0)


def onedcnn_kernel(x_ref, w1_ref, b1_ref, w2_ref, b2_ref,
                   fw1_ref, fb1_ref, fw2_ref, fb2_ref,
                   o_ref, slab1_ref, slab2_ref, flat_ref):
    B, L, Cin = x_ref.shape
    C1 = w1_ref.shape[1]
    C2 = w2_ref.shape[1]
    L1 = L // 2
    L2 = L1 // 2

    # Zero the slabs once: never-written border rows give the conv zero-padding
    # (interior rows are fully overwritten for every batch element).
    slab1_ref[...] = jnp.zeros_like(slab1_ref)
    slab2_ref[...] = jnp.zeros_like(slab2_ref)

    w1 = w1_ref[...]
    b1 = b1_ref[...]
    w2 = w2_ref[...]
    b2 = b2_ref[...]

    for b in range(B):                                     # B is tiny -> unrolled
        _store_slab(slab1_ref, x_ref[b], L, Cin)
        p1 = _conv_relu_pool(slab1_ref, L1, w1, b1)        # (L1, C1)
        _store_slab(slab2_ref, p1, L1, C1)
        p2 = _conv_relu_pool(slab2_ref, L2, w2, b2)        # (L2, C2)
        # Flatten in length-major order (fc1 weight was pre-permuted to match):
        #   flat[b, l*C2 + c] = p2[l, c]
        for l in range(L2):
            flat_ref[b:b + 1, l * C2:(l + 1) * C2] = p2[l:l + 1, :]

    # fc1 + ReLU + fc2 for the whole batch in one go (lane-dense (B, T) operand).
    flat = flat_ref[...]                                                   # (B, T)
    h = jnp.dot(flat, fw1_ref[...], preferred_element_type=jnp.float32) + fb1_ref[...]
    h = jnp.maximum(h, 0.0)
    out = jnp.dot(h, fw2_ref[...], preferred_element_type=jnp.float32) + fb2_ref[...]
    o_ref[...] = out.astype(o_ref.dtype)


# ------------------------------ wrappers --------------------------------------

def prepare_params(params):
    """One-time re-layout of PyTorch-format parameters (hoisted out of the forward pass)."""
    w1, b1, w2, b2, fw1, fb1, fw2, fb2 = params
    c1, cin, k1 = w1.shape               # (16, 8, 3)
    c2, _, k2 = w2.shape                 # (32, 16, 3)
    hdim, t = fw1.shape                  # (128, 992)
    l2 = t // c2                         # 31
    # Conv weights (Cout, Cin, K) -> (K*Cin, Cout); row index = k*Cin + ci.
    w1f = jnp.transpose(w1, (2, 1, 0)).reshape(k1 * cin, c1)
    w2f = jnp.transpose(w2, (2, 1, 0)).reshape(k2 * c1, c2)
    # fc1: torch flattens channel-major (idx = c*L2 + l); the kernel flattens length-major
    # (idx = l*C2 + c).  Pre-permute the weight so the in-kernel flatten is a plain copy.
    fw1p = jnp.transpose(fw1.reshape(hdim, c2, l2), (2, 1, 0)).reshape(t, hdim)
    fw2t = fw2.T
    return (w1f, b1[None, :], w2f, b2[None, :], fw1p, fb1[None, :], fw2t, fb2[None, :])


@jax.jit
def onedcnn_forward(x_ncl, prepped):
    """x_ncl: (B, 8, L) in PyTorch NCL layout; prepped = prepare_params(torch_params)."""
    w1f, b1r, w2f, b2r, fw1p, fb1r, fw2t, fb2r = prepped
    B, Cin, L = x_ncl.shape
    assert L % 4 == 0
    L1 = L // 2
    C1 = w1f.shape[1]
    C2 = w2f.shape[1]
    NC = fw2t.shape[1]
    T = fw1p.shape[0]
    assert T == (L // 4) * C2

    x_lc = jnp.transpose(x_ncl, (0, 2, 1))   # channels-last (B, L, Cin) for the kernel

    return pl.pallas_call(
        onedcnn_kernel,
        out_shape=jax.ShapeDtypeStruct((B, NC), jnp.float32),
        scratch_shapes=[
            pltpu.VMEM((PAD + L + 8, 3 * Cin), jnp.float32),   # conv1 pre-shifted slab
            pltpu.VMEM((PAD + L1 + 8, 3 * C1), jnp.float32),   # conv2 pre-shifted slab
            pltpu.VMEM((B, T), jnp.float32),                   # flattened features
        ],
    )(x_lc, w1f, b1r, w2f, b2r, fw1p, fb1r, fw2t, fb2r)


# ------------------------------- reference ------------------------------------

def ref_forward(x_ncl, params):
    w1, b1, w2, b2, fw1, fb1, fw2, fb2 = params
    P = jax.lax.Precision.HIGHEST

    def conv1d(x, w, b):
        y = jax.lax.conv_general_dilated(
            x, w, window_strides=(1,), padding=[(1, 1)],
            dimension_numbers=("NCH", "OIH", "NCH"), precision=P)
        return y + b[None, :, None]

    def pool(x):  # MaxPool1d(2, 2)
        B, C, L = x.shape
        return jnp.max(x.reshape(B, C, L // 2, 2), axis=-1)

    h = pool(jax.nn.relu(conv1d(x_ncl, w1, b1)))
    h = pool(jax.nn.relu(conv1d(h, w2, b2)))
    h = h.reshape(h.shape[0], -1)
    h = jax.nn.relu(jnp.dot(h, fw1.T, precision=P) + fb1)
    return jnp.dot(h, fw2.T, precision=P) + fb2


# ---------------------------------- main ---------------------------------------

if __name__ == "__main__":
    # window_size = 0.25  ->  t = 992  ->  input length L = 124 (32 * (124 // 4) = 992)
    B, CIN, L = 2, 8, 124
    NUM_CLASSES = 4
    T = 32 * (L // 4)
    assert T == 992

    key = jax.random.PRNGKey(0)
    ks = jax.random.split(key, 9)
    scale = 0.05
    # Parameters in PyTorch layouts (Conv1d: (Cout, Cin, K); Linear: (out_features, in_features)).
    w1 = scale * jax.random.normal(ks[0], (16, 8, 3), jnp.float32)
    b1 = scale * jax.random.normal(ks[1], (16,), jnp.float32)
    w2 = scale * jax.random.normal(ks[2], (32, 16, 3), jnp.float32)
    b2 = scale * jax.random.normal(ks[3], (32,), jnp.float32)
    fw1 = scale * jax.random.normal(ks[4], (128, T), jnp.float32)
    fb1 = scale * jax.random.normal(ks[5], (128,), jnp.float32)
    fw2 = scale * jax.random.normal(ks[6], (NUM_CLASSES, 128), jnp.float32)
    fb2 = scale * jax.random.normal(ks[7], (NUM_CLASSES,), jnp.float32)
    params = (w1, b1, w2, b2, fw1, fb1, fw2, fb2)

    x = jax.random.normal(ks[8], (B, CIN, L), jnp.float32)

    prepped = prepare_params(params)          # one-time weight re-layout (outside the forward)

    out = jax.block_until_ready(onedcnn_forward(x, prepped))
    assert out.shape == (B, NUM_CLASSES)

    ref = jax.block_until_ready(ref_forward(x, params))
    # Default (non-HIGHEST) MXU precision rounds matmul inputs to bf16 -> allow ~1e-3-level slack.
    assert jnp.allclose(out, ref, rtol=2e-2, atol=3e-3), (out, ref)

    print("KERNEL_OK")
</pallas_src>

<mosaic_0001>
module attributes {stable_mosaic.version = 11 : i64} {
  func.func @onedcnn_kernel(%arg0: memref<2x124x8xf32, #tpu.memory_space<vmem>>, %arg1: memref<24x16xf32, #tpu.memory_space<vmem>>, %arg2: memref<1x16xf32, #tpu.memory_space<vmem>>, %arg3: memref<48x32xf32, #tpu.memory_space<vmem>>, %arg4: memref<1x32xf32, #tpu.memory_space<vmem>>, %arg5: memref<992x128xf32, #tpu.memory_space<vmem>>, %arg6: memref<1x128xf32, #tpu.memory_space<vmem>>, %arg7: memref<128x4xf32, #tpu.memory_space<vmem>>, %arg8: memref<1x4xf32, #tpu.memory_space<vmem>>, %arg9: memref<2x4xf32, #tpu.memory_space<vmem>>, %arg10: memref<140x24xf32, #tpu.memory_space<vmem>>, %arg11: memref<78x48xf32, #tpu.memory_space<vmem>>, %arg12: memref<2x992xf32, #tpu.memory_space<vmem>>) attributes {dimension_semantics = [], scalar_prefetch = 0 : i64, scratch_operands = 3 : i64, tpu.core_type = #tpu.core_type<tc>} {
    %cst = arith.constant 0.000000e+00 : f32
    %0 = vector.broadcast %cst : f32 to vector<140x24xf32>
    %c0 = arith.constant 0 : index
    %c0_0 = arith.constant 0 : index
    %1 = vector.load %arg10[%c0, %c0_0] : memref<140x24xf32, #tpu.memory_space<vmem>>, vector<140x24xf32>
    tpu.vector_store %arg10[%c0, %c0_0], %0 {strides = array<i32>} : memref<140x24xf32, #tpu.memory_space<vmem>>, vector<140x24xf32>,
    %cst_1 = arith.constant 0.000000e+00 : f32
    %2 = vector.broadcast %cst_1 : f32 to vector<78x48xf32>
    %c0_2 = arith.constant 0 : index
    %c0_3 = arith.constant 0 : index
    %3 = vector.load %arg11[%c0_2, %c0_3] : memref<78x48xf32, #tpu.memory_space<vmem>>, vector<78x48xf32>
    tpu.vector_store %arg11[%c0_2, %c0_3], %2 {strides = array<i32>} : memref<78x48xf32, #tpu.memory_space<vmem>>, vector<78x48xf32>,
    %c0_4 = arith.constant 0 : index
    %c0_5 = arith.constant 0 : index
    %4 = vector.load %arg1[%c0_4, %c0_5] : memref<24x16xf32, #tpu.memory_space<vmem>>, vector<24x16xf32>
    %c0_6 = arith.constant 0 : index
    %c0_7 = arith.constant 0 : index
    %5 = vector.load %arg2[%c0_6, %c0_7] : memref<1x16xf32, #tpu.memory_space<vmem>>, vector<1x16xf32>
    %c0_8 = arith.constant 0 : index
    %c0_9 = arith.constant 0 : index
    %6 = vector.load %arg3[%c0_8, %c0_9] : memref<48x32xf32, #tpu.memory_space<vmem>>, vector<48x32xf32>
    %c0_10 = arith.constant 0 : index
    %c0_11 = arith.constant 0 : index
    %7 = vector.load %arg4[%c0_10, %c0_11] : memref<1x32xf32, #tpu.memory_space<vmem>>, vector<1x32xf32>
    %c0_12 = arith.constant 0 : index
    %c0_13 = arith.constant 0 : index
    %c0_14 = arith.constant 0 : index
    %8 = vector.load %arg0[%c0_12, %c0_13, %c0_14] : memref<2x124x8xf32, #tpu.memory_space<vmem>>, vector<1x124x8xf32>
    %9 = vector.shape_cast %8 : vector<1x124x8xf32> to vector<124x8xf32>
    %c9 = arith.constant 9 : index
    %c0_15 = arith.constant 0 : index
    %10 = vector.load %arg10[%c9, %c0_15] : memref<140x24xf32, #tpu.memory_space<vmem>>, vector<124x8xf32>
    tpu.vector_store %arg10[%c9, %c0_15], %9 {strides = array<i32>} : memref<140x24xf32, #tpu.memory_space<vmem>>, vector<124x8xf32>,
    %c8 = arith.constant 8 : index
    %c8_16 = arith.constant 8 : index
    %11 = vector.load %arg10[%c8, %c8_16] : memref<140x24xf32, #tpu.memory_space<vmem>>, vector<124x8xf32>
    tpu.vector_store %arg10[%c8, %c8_16], %9 {strides = array<i32>} : memref<140x24xf32, #tpu.memory_space<vmem>>, vector<124x8xf32>,
    %c7 = arith.constant 7 : index
    %c16 = arith.constant 16 : index
    %12 = vector.load %arg10[%c7, %c16] : memref<140x24xf32, #tpu.memory_space<vmem>>, vector<124x8xf32>
    tpu.vector_store %arg10[%c7, %c16], %9 {strides = array<i32>} : memref<140x24xf32, #tpu.memory_space<vmem>>, vector<124x8xf32>,
    %c8_17 = arith.constant 8 : index
    %c0_18 = arith.constant 0 : index
    %13 = tpu.strided_load %arg10[%c8_17, %c0_18] {strides = array<i32: 2, 1>} : memref<140x24xf32, #tpu.memory_space<vmem>>, vector<62x24xf32>
    %c9_19 = arith.constant 9 : index
    %c0_20 = arith.constant 0 : index
    %14 = tpu.strided_load %arg10[%c9_19, %c0_20] {strides = array<i32: 2, 1>} : memref<140x24xf32, #tpu.memory_space<vmem>>, vector<62x24xf32>
    %cst_21 = arith.constant dense<0.000000e+00> : vector<62x16xf32>
    %15 = tpu.matmul %13, %4, %cst_21 {dimension_numbers = #tpu.dot_dimension_numbers<[1], [0], [0], [1], [0, 0, 1, 1], [], []>} : vector<62x24xf32>, vector<24x16xf32>, vector<62x16xf32> -> vector<62x16xf32>
    %cst_22 = arith.constant dense<0.000000e+00> : vector<62x16xf32>
    %16 = tpu.matmul %14, %4, %cst_22 {dimension_numbers = #tpu.dot_dimension_numbers<[1], [0], [0], [1], [0, 0, 1, 1], [], []>} : vector<62x24xf32>, vector<24x16xf32>, vector<62x16xf32> -> vector<62x16xf32>
    %17 = arith.maximumf %15, %16 : vector<62x16xf32>
    %18 = vector.broadcast %5 : vector<1x16xf32> to vector<62x16xf32>
    %19 = arith.addf %17, %18 : vector<62x16xf32>
    %cst_23 = arith.constant 0.000000e+00 : f32
    %20 = vector.broadcast %cst_23 : f32 to vector<62x16xf32>
    %21 = arith.maximumf %19, %20 : vector<62x16xf32>
    %c9_24 = arith.constant 9 : index
    %c0_25 = arith.constant 0 : index
    %22 = vector.load %arg11[%c9_24, %c0_25] : memref<78x48xf32, #tpu.memory_space<vmem>>, vector<62x16xf32>
    tpu.vector_store %arg11[%c9_24, %c0_25], %21 {strides = array<i32>} : memref<78x48xf32, #tpu.memory_space<vmem>>, vector<62x16xf32>,
    %c8_26 = arith.constant 8 : index
    %c16_27 = arith.constant 16 : index
    %23 = vector.load %arg11[%c8_26, %c16_27] : memref<78x48xf32, #tpu.memory_space<vmem>>, vector<62x16xf32>
    tpu.vector_store %arg11[%c8_26, %c16_27], %21 {strides = array<i32>} : memref<78x48xf32, #tpu.memory_space<vmem>>, vector<62x16xf32>,
    %c7_28 = arith.constant 7 : index
    %c32 = arith.constant 32 : index
    %24 = vector.load %arg11[%c7_28, %c32] : memref<78x48xf32, #tpu.memory_space<vmem>>, vector<62x16xf32>
    tpu.vector_store %arg11[%c7_28, %c32], %21 {strides = array<i32>} : memref<78x48xf32, #tpu.memory_space<vmem>>, vector<62x16xf32>,
    %c8_29 = arith.constant 8 : index
    %c0_30 = arith.constant 0 : index
    %25 = tpu.strided_load %arg11[%c8_29, %c0_30] {strides = array<i32: 2, 1>} : memref<78x48xf32, #tpu.memory_space<vmem>>, vector<31x48xf32>
    %c9_31 = arith.constant 9 : index
    %c0_32 = arith.constant 0 : index
    %26 = tpu.strided_load %arg11[%c9_31, %c0_32] {strides = array<i32: 2, 1>} : memref<78x48xf32, #tpu.memory_space<vmem>>, vector<31x48xf32>
    %cst_33 = arith.constant dense<0.000000e+00> : vector<31x32xf32>
    %27 = tpu.matmul %25, %6, %cst_33 {dimension_numbers = #tpu.dot_dimension_numbers<[1], [0], [0], [1], [0, 0, 1, 1], [], []>} : vector<31x48xf32>, vector<48x32xf32>, vector<31x32xf32> -> vector<31x32xf32>
    %cst_34 = arith.constant dense<0.000000e+00> : vector<31x32xf32>
    %28 = tpu.matmul %26, %6, %cst_34 {dimension_numbers = #tpu.dot_dimension_numbers<[1], [0], [0], [1], [0, 0, 1, 1], [], []>} : vector<31x48xf32>, vector<48x32xf32>, vector<31x32xf32> -> vector<31x32xf32>
    %29 = arith.maximumf %27, %28 : vector<31x32xf32>
    %30 = vector.broadcast %7 : vector<1x32xf32> to vector<31x32xf32>
    %31 = arith.addf %29, %30 : vector<31x32xf32>
    %cst_35 = arith.constant 0.000000e+00 : f32
    %32 = vector.broadcast %cst_35 : f32 to vector<31x32xf32>
    %33 = arith.maximumf %31, %32 : vector<31x32xf32>
    %34 = vector.extract_strided_slice %33 {offsets = [0, 0], sizes = [1, 32], strides = [1, 1]} : vector<31x32xf32> to vector<1x32xf32>
    %c0_36 = arith.constant 0 : index
    %c0_37 = arith.constant 0 : index
    %35 = vector.load %arg12[%c0_36, %c0_37] : memref<2x992xf32, #tpu.memory_space<vmem>>, vector<1x32xf32>
    tpu.vector_store %arg12[%c0_36, %c0_37], %34 {strides = array<i32>} : memref<2x992xf32, #tpu.memory_space<vmem>>, vector<1x32xf32>,
    %36 = vector.extract_strided_slice %33 {offsets = [1, 0], sizes = [1, 32], strides = [1, 1]} : vector<31x32xf32> to vector<1x32xf32>
    %c0_38 = arith.constant 0 : index
    %c32_39 = arith.constant 32 : index
    %37 = vector.load %arg12[%c0_38, %c32_39] : memref<2x992xf32, #tpu.memory_space<vmem>>, vector<1x32xf32>
    tpu.vector_store %arg12[%c0_38, %c32_39], %36 {strides = array<i32>} : memref<2x992xf32, #tpu.memory_space<vmem>>, vector<1x32xf32>,
    %38 = vector.extract_strided_slice %33 {offsets = [2, 0], sizes = [1, 32], strides = [1, 1]} : vector<31x32xf32> to vector<1x32xf32>
    %c0_40 = arith.constant 0 : index
    %c64 = arith.constant 64 : index
    %39 = vector.load %arg12[%c0_40, %c64] : memref<2x992xf32, #tpu.memory_space<vmem>>, vector<1x32xf32>
    tpu.vector_store %arg12[%c0_40, %c64], %38 {strides = array<i32>} : memref<2x992xf32, #tpu.memory_space<vmem>>, vector<1x32xf32>,
    %40 = vector.extract_strided_slice %33 {offsets = [3, 0], sizes = [1, 32], strides = [1, 1]} : vector<31x32xf32> to vector<1x32xf32>
    %c0_41 = arith.constant 0 : index
    %c96 = arith.constant 96 : index
    %41 = vector.load %arg12[%c0_41, %c96] : memref<2x992xf32, #tpu.memory_space<vmem>>, vector<1x32xf32>
    tpu.vector_store %arg12[%c0_41, %c96], %40 {strides = array<i32>} : memref<2x992xf32, #tpu.memory_space<vmem>>, vector<1x32xf32>,
    %42 = vector.extract_strided_slice %33 {offsets = [4, 0], sizes = [1, 32], strides = [1, 1]} : vector<31x32xf32> to vector<1x32xf32>
    %c0_42 = arith.constant 0 : index
    %c128 = arith.constant 128 : index
    %43 = vector.load %arg12[%c0_42, %c128] : memref<2x992xf32, #tpu.memory_space<vmem>>, vector<1x32xf32>
    tpu.vector_store %arg12[%c0_42, %c128], %42 {strides = array<i32>} : memref<2x992xf32, #tpu.memory_space<vmem>>, vector<1x32xf32>,
    %44 = vector.extract_strided_slice %33 {offsets = [5, 0], sizes = [1, 32], strides = [1, 1]} : vector<31x32xf32> to vector<1x32xf32>
    %c0_43 = arith.constant 0 : index
    %c160 = arith.constant 160 : index
    %45 = vector.load %arg12[%c0_43, %c160] : memref<2x992xf32, #tpu.memory_space<vmem>>, vector<1x32xf32>
    tpu.vector_store %arg12[%c0_43, %c160], %44 {strides = array<i32>} : memref<2x992xf32, #tpu.memory_space<vmem>>, vector<1x32xf32>,
    %46 = vector.extract_strided_slice %33 {offsets = [6, 0], sizes = [1, 32], strides = [1, 1]} : vector<31x32xf32> to vector<1x32xf32>
    %c0_44 = arith.constant 0 : index
    %c192 = arith.constant 192 : index
    %47 = vector.load %arg12[%c0_44, %c192] : memref<2x992xf32, #tpu.memory_space<vmem>>, vector<1x32xf32>
    tpu.vector_store %arg12[%c0_44, %c192], %46 {strides = array<i32>} : memref<2x992xf32, #tpu.memory_space<vmem>>, vector<1x32xf32>,
    %48 = vector.extract_strided_slice %33 {offsets = [7, 0], sizes = [1, 32], strides = [1, 1]} : vector<31x32xf32> to vector<1x32xf32>
    %c0_45 = arith.constant 0 : index
    %c224 = arith.constant 224 : index
    %49 = vector.load %arg12[%c0_45, %c224] : memref<2x992xf32, #tpu.memory_space<vmem>>, vector<1x32xf32>
    tpu.vector_store %arg12[%c0_45, %c224], %48 {strides = array<i32>} : memref<2x992xf32, #tpu.memory_space<vmem>>, vector<1x32xf32>,
    %50 = vector.extract_strided_slice %33 {offsets = [8, 0], sizes = [1, 32], strides = [1, 1]} : vector<31x32xf32> to vector<1x32xf32>
    %c0_46 = arith.constant 0 : index
    %c256 = arith.constant 256 : index
    %51 = vector.load %arg12[%c0_46, %c256] : memref<2x992xf32, #tpu.memory_space<vmem>>, vector<1x32xf32>
    tpu.vector_store %arg12[%c0_46, %c256], %50 {strides = array<i32>} : memref<2x992xf32, #tpu.memory_space<vmem>>, vector<1x32xf32>,
    %52 = vector.extract_strided_slice %33 {offsets = [9, 0], sizes = [1, 32], strides = [1, 1]} : vector<31x32xf32> to vector<1x32xf32>
    %c0_47 = arith.constant 0 : index
    %c288 = arith.constant 288 : index
    %53 = vector.load %arg12[%c0_47, %c288] : memref<2x992xf32, #tpu.memory_space<vmem>>, vector<1x32xf32>
    tpu.vector_store %arg12[%c0_47, %c288], %52 {strides = array<i32>} : memref<2x992xf32, #tpu.memory_space<vmem>>, vector<1x32xf32>,
    %54 = vector.extract_strided_slice %33 {offsets = [10, 0], sizes = [1, 32], strides = [1, 1]} : vector<31x32xf32> to vector<1x32xf32>
    %c0_48 = arith.constant 0 : index
    %c320 = arith.constant 320 : index
    %55 = vector.load %arg12[%c0_48, %c320] : memref<2x992xf32, #tpu.memory_space<vmem>>, vector<1x32xf32>
    tpu.vector_store %arg12[%c0_48, %c320], %54 {strides = array<i32>} : memref<2x992xf32, #tpu.memory_space<vmem>>, vector<1x32xf32>,
    %56 = vector.extract_strided_slice %33 {offsets = [11, 0], sizes = [1, 32], strides = [1, 1]} : vector<31x32xf32> to vector<1x32xf32>
    %c0_49 = arith.constant 0 : index
    %c352 = arith.constant 352 : index
    %57 = vector.load %arg12[%c0_49, %c352] : memref<2x992xf32, #tpu.memory_space<vmem>>, vector<1x32xf32>
    tpu.vector_store %arg12[%c0_49, %c352], %56 {strides = array<i32>} : memref<2x992xf32, #tpu.memory_space<vmem>>, vector<1x32xf32>,
    %58 = vector.extract_strided_slice %33 {offsets = [12, 0], sizes = [1, 32], strides = [1, 1]} : vector<31x32xf32> to vector<1x32xf32>
    %c0_50 = arith.constant 0 : index
    %c384 = arith.constant 384 : index
    %59 = vector.load %arg12[%c0_50, %c384] : memref<2x992xf32, #tpu.memory_space<vmem>>, vector<1x32xf32>
    tpu.vector_store %arg12[%c0_50, %c384], %58 {strides = array<i32>} : memref<2x992xf32, #tpu.memory_space<vmem>>, vector<1x32xf32>,
    %60 = vector.extract_strided_slice %33 {offsets = [13, 0], sizes = [1, 32], strides = [1, 1]} : vector<31x32xf32> to vector<1x32xf32>
    %c0_51 = arith.constant 0 : index
    %c416 = arith.constant 416 : index
    %61 = vector.load %arg12[%c0_51, %c416] : memref<2x992xf32, #tpu.memory_space<vmem>>, vector<1x32xf32>
    tpu.vector_store %arg12[%c0_51, %c416], %60 {strides = array<i32>} : memref<2x992xf32, #tpu.memory_space<vmem>>, vector<1x32xf32>,
    %62 = vector.extract_strided_slice %33 {offsets = [14, 0], sizes = [1, 32], strides = [1, 1]} : vector<31x32xf32> to vector<1x32xf32>
    %c0_52 = arith.constant 0 : index
    %c448 = arith.constant 448 : index
    %63 = vector.load %arg12[%c0_52, %c448] : memref<2x992xf32, #tpu.memory_space<vmem>>, vector<1x32xf32>
    tpu.vector_store %arg12[%c0_52, %c448], %62 {strides = array<i32>} : memref<2x992xf32, #tpu.memory_space<vmem>>, vector<1x32xf32>,
    %64 = vector.extract_strided_slice %33 {offsets = [15, 0], sizes = [1, 32], strides = [1, 1]} : vector<31x32xf32> to vector<1x32xf32>
    %c0_53 = arith.constant 0 : index
    %c480 = arith.constant 480 : index
    %65 = vector.load %arg12[%c0_53, %c480] : memref<2x992xf32, #tpu.memory_space<vmem>>, vector<1x32xf32>
    tpu.vector_store %arg12[%c0_53, %c480], %64 {strides = array<i32>} : memref<2x992xf32, #tpu.memory_space<vmem>>, vector<1x32xf32>,
    %66 = vector.extract_strided_slice %33 {offsets = [16, 0], sizes = [1, 32], strides = [1, 1]} : vector<31x32xf32> to vector<1x32xf32>
    %c0_54 = arith.constant 0 : index
    %c512 = arith.constant 512 : index
    %67 = vector.load %arg12[%c0_54, %c512] : memref<2x992xf32, #tpu.memory_space<vmem>>, vector<1x32xf32>
    tpu.vector_store %arg12[%c0_54, %c512], %66 {strides = array<i32>} : memref<2x992xf32, #tpu.memory_space<vmem>>, vector<1x32xf32>,
    %68 = vector.extract_strided_slice %33 {offsets = [17, 0], sizes = [1, 32], strides = [1, 1]} : vector<31x32xf32> to vector<1x32xf32>
    %c0_55 = arith.constant 0 : index
    %c544 = arith.constant 544 : index
    %69 = vector.load %arg12[%c0_55, %c544] : memref<2x992xf32, #tpu.memory_space<vmem>>, vector<1x32xf32>
    tpu.vector_store %arg12[%c0_55, %c544], %68 {strides = array<i32>} : memref<2x992xf32, #tpu.memory_space<vmem>>, vector<1x32xf32>,
    %70 = vector.extract_strided_slice %33 {offsets = [18, 0], sizes = [1, 32], strides = [1, 1]} : vector<31x32xf32> to vector<1x32xf32>
    %c0_56 = arith.constant 0 : index
    %c576 = arith.constant 576 : index
    %71 = vector.load %arg12[%c0_56, %c576] : memref<2x992xf32, #tpu.memory_space<vmem>>, vector<1x32xf32>
    tpu.vector_store %arg12[%c0_56, %c576], %70 {strides = array<i32>} : memref<2x992xf32, #tpu.memory_space<vmem>>, vector<1x32xf32>,
    %72 = vector.extract_strided_slice %33 {offsets = [19, 0], sizes = [1, 32], strides = [1, 1]} : vector<31x32xf32> to vector<1x32xf32>
    %c0_57 = arith.constant 0 : index
    %c608 = arith.constant 608 : index
    %73 = vector.load %arg12[%c0_57, %c608] : memref<2x992xf32, #tpu.memory_space<vmem>>, vector<1x32xf32>
    tpu.vector_store %arg12[%c0_57, %c608], %72 {strides = array<i32>} : memref<2x992xf32, #tpu.memory_space<vmem>>, vector<1x32xf32>,
    %74 = vector.extract_strided_slice %33 {offsets = [20, 0], sizes = [1, 32], strides = [1, 1]} : vector<31x32xf32> to vector<1x32xf32>
    %c0_58 = arith.constant 0 : index
    %c640 = arith.constant 640 : index
    %75 = vector.load %arg12[%c0_58, %c640] : memref<2x992xf32, #tpu.memory_space<vmem>>, vector<1x32xf32>
    tpu.vector_store %arg12[%c0_58, %c640], %74 {strides = array<i32>} : memref<2x992xf32, #tpu.memory_space<vmem>>, vector<1x32xf32>,
    %76 = vector.extract_strided_slice %33 {offsets = [21, 0], sizes = [1, 32], strides = [1, 1]} : vector<31x32xf32> to vector<1x32xf32>
    %c0_59 = arith.constant 0 : index
    %c672 = arith.constant 672 : index
    %77 = vector.load %arg12[%c0_59, %c672] : memref<2x992xf32, #tpu.memory_space<vmem>>, vector<1x32xf32>
    tpu.vector_store %arg12[%c0_59, %c672], %76 {strides = array<i32>} : memref<2x992xf32, #tpu.memory_space<vmem>>, vector<1x32xf32>,
    %78 = vector.extract_strided_slice %33 {offsets = [22, 0], sizes = [1, 32], strides = [1, 1]} : vector<31x32xf32> to vector<1x32xf32>
    %c0_60 = arith.constant 0 : index
    %c704 = arith.constant 704 : index
    %79 = vector.load %arg12[%c0_60, %c704] : memref<2x992xf32, #tpu.memory_space<vmem>>, vector<1x32xf32>
    tpu.vector_store %arg12[%c0_60, %c704], %78 {strides = array<i32>} : memref<2x992xf32, #tpu.memory_space<vmem>>, vector<1x32xf32>,
    %80 = vector.extract_strided_slice %33 {offsets = [23, 0], sizes = [1, 32], strides = [1, 1]} : vector<31x32xf32> to vector<1x32xf32>
    %c0_61 = arith.constant 0 : index
    %c736 = arith.constant 736 : index
    %81 = vector.load %arg12[%c0_61, %c736] : memref<2x992xf32, #tpu.memory_space<vmem>>, vector<1x32xf32>
    tpu.vector_store %arg12[%c0_61, %c736], %80 {strides = array<i32>} : memref<2x992xf32, #tpu.memory_space<vmem>>, vector<1x32xf32>,
    %82 = vector.extract_strided_slice %33 {offsets = [24, 0], sizes = [1, 32], strides = [1, 1]} : vector<31x32xf32> to vector<1x32xf32>
    %c0_62 = arith.constant 0 : index
    %c768 = arith.constant 768 : index
    %83 = vector.load %arg12[%c0_62, %c768] : memref<2x992xf32, #tpu.memory_space<vmem>>, vector<1x32xf32>
    tpu.vector_store %arg12[%c0_62, %c768], %82 {strides = array<i32>} : memref<2x992xf32, #tpu.memory_space<vmem>>, vector<1x32xf32>,
    %84 = vector.extract_strided_slice %33 {offsets = [25, 0], sizes = [1, 32], strides = [1, 1]} : vector<31x32xf32> to vector<1x32xf32>
    %c0_63 = arith.constant 0 : index
    %c800 = arith.constant 800 : index
    %85 = vector.load %arg12[%c0_63, %c800] : memref<2x992xf32, #tpu.memory_space<vmem>>, vector<1x32xf32>
    tpu.vector_store %arg12[%c0_63, %c800], %84 {strides = array<i32>} : memref<2x992xf32, #tpu.memory_space<vmem>>, vector<1x32xf32>,
    %86 = vector.extract_strided_slice %33 {offsets = [26, 0], sizes = [1, 32], strides = [1, 1]} : vector<31x32xf32> to vector<1x32xf32>
    %c0_64 = arith.constant 0 : index
    %c832 = arith.constant 832 : index
    %87 = vector.load %arg12[%c0_64, %c832] : memref<2x992xf32, #tpu.memory_space<vmem>>, vector<1x32xf32>
    tpu.vector_store %arg12[%c0_64, %c832], %86 {strides = array<i32>} : memref<2x992xf32, #tpu.memory_space<vmem>>, vector<1x32xf32>,
    %88 = vector.extract_strided_slice %33 {offsets = [27, 0], sizes = [1, 32], strides = [1, 1]} : vector<31x32xf32> to vector<1x32xf32>
    %c0_65 = arith.constant 0 : index
    %c864 = arith.constant 864 : index
    %89 = vector.load %arg12[%c0_65, %c864] : memref<2x992xf32, #tpu.memory_space<vmem>>, vector<1x32xf32>
    tpu.vector_store %arg12[%c0_65, %c864], %88 {strides = array<i32>} : memref<2x992xf32, #tpu.memory_space<vmem>>, vector<1x32xf32>,
    %90 = vector.extract_strided_slice %33 {offsets = [28, 0], sizes = [1, 32], strides = [1, 1]} : vector<31x32xf32> to vector<1x32xf32>
    %c0_66 = arith.constant 0 : index
    %c896 = arith.constant 896 : index
    %91 = vector.load %arg12[%c0_66, %c896] : memref<2x992xf32, #tpu.memory_space<vmem>>, vector<1x32xf32>
    tpu.vector_store %arg12[%c0_66, %c896], %90 {strides = array<i32>} : memref<2x992xf32, #tpu.memory_space<vmem>>, vector<1x32xf32>,
    %92 = vector.extract_strided_slice %33 {offsets = [29, 0], sizes = [1, 32], strides = [1, 1]} : vector<31x32xf32> to vector<1x32xf32>
    %c0_67 = arith.constant 0 : index
    %c928 = arith.constant 928 : index
    %93 = vector.load %arg12[%c0_67, %c928] : memref<2x992xf32, #tpu.memory_space<vmem>>, vector<1x32xf32>
    tpu.vector_store %arg12[%c0_67, %c928], %92 {strides = array<i32>} : memref<2x992xf32, #tpu.memory_space<vmem>>, vector<1x32xf32>,
    %94 = vector.extract_strided_slice %33 {offsets = [30, 0], sizes = [1, 32], strides = [1, 1]} : vector<31x32xf32> to vector<1x32xf32>
    %c0_68 = arith.constant 0 : index
    %c960 = arith.constant 960 : index
    %95 = vector.load %arg12[%c0_68, %c960] : memref<2x992xf32, #tpu.memory_space<vmem>>, vector<1x32xf32>
    tpu.vector_store %arg12[%c0_68, %c960], %94 {strides = array<i32>} : memref<2x992xf32, #tpu.memory_space<vmem>>, vector<1x32xf32>,
    %c1 = arith.constant 1 : index
    %c0_69 = arith.constant 0 : index
    %c0_70 = arith.constant 0 : index
    %96 = vector.load %arg0[%c1, %c0_69, %c0_70] : memref<2x124x8xf32, #tpu.memory_space<vmem>>, vector<1x124x8xf32>
    %97 = vector.shape_cast %96 : vector<1x124x8xf32> to vector<124x8xf32>
    %c9_71 = arith.constant 9 : index
    %c0_72 = arith.constant 0 : index
    %98 = vector.load %arg10[%c9_71, %c0_72] : memref<140x24xf32, #tpu.memory_space<vmem>>, vector<124x8xf32>
    tpu.vector_store %arg10[%c9_71, %c0_72], %97 {strides = array<i32>} : memref<140x24xf32, #tpu.memory_space<vmem>>, vector<124x8xf32>,
    %c8_73 = arith.constant 8 : index
    %c8_74 = arith.constant 8 : index
    %99 = vector.load %arg10[%c8_73, %c8_74] : memref<140x24xf32, #tpu.memory_space<vmem>>, vector<124x8xf32>
    tpu.vector_store %arg10[%c8_73, %c8_74], %97 {strides = array<i32>} : memref<140x24xf32, #tpu.memory_space<vmem>>, vector<124x8xf32>,
    %c7_75 = arith.constant 7 : index
    %c16_76 = arith.constant 16 : index
    %100 = vector.load %arg10[%c7_75, %c16_76] : memref<140x24xf32, #tpu.memory_space<vmem>>, vector<124x8xf32>
    tpu.vector_store %arg10[%c7_75, %c16_76], %97 {strides = array<i32>} : memref<140x24xf32, #tpu.memory_space<vmem>>, vector<124x8xf32>,
    %c8_77 = arith.constant 8 : index
    %c0_78 = arith.constant 0 : index
    %101 = tpu.strided_load %arg10[%c8_77, %c0_78] {strides = array<i32: 2, 1>} : memref<140x24xf32, #tpu.memory_space<vmem>>, vector<62x24xf32>
    %c9_79 = arith.constant 9 : index
    %c0_80 = arith.constant 0 : index
    %102 = tpu.strided_load %arg10[%c9_79, %c0_80] {strides = array<i32: 2, 1>} : memref<140x24xf32, #tpu.memory_space<vmem>>, vector<62x24xf32>
    %cst_81 = arith.constant dense<0.000000e+00> : vector<62x16xf32>
    %103 = tpu.matmul %101, %4, %cst_81 {dimension_numbers = #tpu.dot_dimension_numbers<[1], [0], [0], [1], [0, 0, 1, 1], [], []>} : vector<62x24xf32>, vector<24x16xf32>, vector<62x16xf32> -> vector<62x16xf32>
    %cst_82 = arith.constant dense<0.000000e+00> : vector<62x16xf32>
    %104 = tpu.matmul %102, %4, %cst_82 {dimension_numbers = #tpu.dot_dimension_numbers<[1], [0], [0], [1], [0, 0, 1, 1], [], []>} : vector<62x24xf32>, vector<24x16xf32>, vector<62x16xf32> -> vector<62x16xf32>
    %105 = arith.maximumf %103, %104 : vector<62x16xf32>
    %106 = vector.broadcast %5 : vector<1x16xf32> to vector<62x16xf32>
    %107 = arith.addf %105, %106 : vector<62x16xf32>
    %cst_83 = arith.constant 0.000000e+00 : f32
    %108 = vector.broadcast %cst_83 : f32 to vector<62x16xf32>
    %109 = arith.maximumf %107, %108 : vector<62x16xf32>
    %c9_84 = arith.constant 9 : index
    %c0_85 = arith.constant 0 : index
    %110 = vector.load %arg11[%c9_84, %c0_85] : memref<78x48xf32, #tpu.memory_space<vmem>>, vector<62x16xf32>
    tpu.vector_store %arg11[%c9_84, %c0_85], %109 {strides = array<i32>} : memref<78x48xf32, #tpu.memory_space<vmem>>, vector<62x16xf32>,
    %c8_86 = arith.constant 8 : index
    %c16_87 = arith.constant 16 : index
    %111 = vector.load %arg11[%c8_86, %c16_87] : memref<78x48xf32, #tpu.memory_space<vmem>>, vector<62x16xf32>
    tpu.vector_store %arg11[%c8_86, %c16_87], %109 {strides = array<i32>} : memref<78x48xf32, #tpu.memory_space<vmem>>, vector<62x16xf32>,
    %c7_88 = arith.constant 7 : index
    %c32_89 = arith.constant 32 : index
    %112 = vector.load %arg11[%c7_88, %c32_89] : memref<78x48xf32, #tpu.memory_space<vmem>>, vector<62x16xf32>
    tpu.vector_store %arg11[%c7_88, %c32_89], %109 {strides = array<i32>} : memref<78x48xf32, #tpu.memory_space<vmem>>, vector<62x16xf32>,
    %c8_90 = arith.constant 8 : index
    %c0_91 = arith.constant 0 : index
    %113 = tpu.strided_load %arg11[%c8_90, %c0_91] {strides = array<i32: 2, 1>} : memref<78x48xf32, #tpu.memory_space<vmem>>, vector<31x48xf32>
    %c9_92 = arith.constant 9 : index
    %c0_93 = arith.constant 0 : index
    %114 = tpu.strided_load %arg11[%c9_92, %c0_93] {strides = array<i32: 2, 1>} : memref<78x48xf32, #tpu.memory_space<vmem>>, vector<31x48xf32>
    %cst_94 = arith.constant dense<0.000000e+00> : vector<31x32xf32>
    %115 = tpu.matmul %113, %6, %cst_94 {dimension_numbers = #tpu.dot_dimension_numbers<[1], [0], [0], [1], [0, 0, 1, 1], [], []>} : vector<31x48xf32>, vector<48x32xf32>, vector<31x32xf32> -> vector<31x32xf32>
    %cst_95 = arith.constant dense<0.000000e+00> : vector<31x32xf32>
    %116 = tpu.matmul %114, %6, %cst_95 {dimension_numbers = #tpu.dot_dimension_numbers<[1], [0], [0], [1], [0, 0, 1, 1], [], []>} : vector<31x48xf32>, vector<48x32xf32>, vector<31x32xf32> -> vector<31x32xf32>
    %117 = arith.maximumf %115, %116 : vector<31x32xf32>
    %118 = vector.broadcast %7 : vector<1x32xf32> to vector<31x32xf32>
    %119 = arith.addf %117, %118 : vector<31x32xf32>
    %cst_96 = arith.constant 0.000000e+00 : f32
    %120 = vector.broadcast %cst_96 : f32 to vector<31x32xf32>
    %121 = arith.maximumf %119, %120 : vector<31x32xf32>
    %122 = vector.extract_strided_slice %121 {offsets = [0, 0], sizes = [1, 32], strides = [1, 1]} : vector<31x32xf32> to vector<1x32xf32>
    %c1_97 = arith.constant 1 : index
    %c0_98 = arith.constant 0 : index
    %123 = vector.load %arg12[%c1_97, %c0_98] : memref<2x992xf32, #tpu.memory_space<vmem>>, vector<1x32xf32>
    tpu.vector_store %arg12[%c1_97, %c0_98], %122 {strides = array<i32>} : memref<2x992xf32, #tpu.memory_space<vmem>>, vector<1x32xf32>,
    %124 = vector.extract_strided_slice %121 {offsets = [1, 0], sizes = [1, 32], strides = [1, 1]} : vector<31x32xf32> to vector<1x32xf32>
    %c1_99 = arith.constant 1 : index
    %c32_100 = arith.constant 32 : index
    %125 = vector.load %arg12[%c1_99, %c32_100] : memref<2x992xf32, #tpu.memory_space<vmem>>, vector<1x32xf32>
    tpu.vector_store %arg12[%c1_99, %c32_100], %124 {strides = array<i32>} : memref<2x992xf32, #tpu.memory_space<vmem>>, vector<1x32xf32>,
    %126 = vector.extract_strided_slice %121 {offsets = [2, 0], sizes = [1, 32], strides = [1, 1]} : vector<31x32xf32> to vector<1x32xf32>
    %c1_101 = arith.constant 1 : index
    %c64_102 = arith.constant 64 : index
    %127 = vector.load %arg12[%c1_101, %c64_102] : memref<2x992xf32, #tpu.memory_space<vmem>>, vector<1x32xf32>
    tpu.vector_store %arg12[%c1_101, %c64_102], %126 {strides = array<i32>} : memref<2x992xf32, #tpu.memory_space<vmem>>, vector<1x32xf32>,
    %128 = vector.extract_strided_slice %121 {offsets = [3, 0], sizes = [1, 32], strides = [1, 1]} : vector<31x32xf32> to vector<1x32xf32>
    %c1_103 = arith.constant 1 : index
    %c96_104 = arith.constant 96 : index
    %129 = vector.load %arg12[%c1_103, %c96_104] : memref<2x992xf32, #tpu.memory_space<vmem>>, vector<1x32xf32>
    tpu.vector_store %arg12[%c1_103, %c96_104], %128 {strides = array<i32>} : memref<2x992xf32, #tpu.memory_space<vmem>>, vector<1x32xf32>,
    %130 = vector.extract_strided_slice %121 {offsets = [4, 0], sizes = [1, 32], strides = [1, 1]} : vector<31x32xf32> to vector<1x32xf32>
    %c1_105 = arith.constant 1 : index
    %c128_106 = arith.constant 128 : index
    %131 = vector.load %arg12[%c1_105, %c128_106] : memref<2x992xf32, #tpu.memory_space<vmem>>, vector<1x32xf32>
    tpu.vector_store %arg12[%c1_105, %c128_106], %130 {strides = array<i32>} : memref<2x992xf32, #tpu.memory_space<vmem>>, vector<1x32xf32>,
    %132 = vector.extract_strided_slice %121 {offsets = [5, 0], sizes = [1, 32], strides = [1, 1]} : vector<31x32xf32> to vector<1x32xf32>
    %c1_107 = arith.constant 1 : index
    %c160_108 = arith.constant 160 : index
    %133 = vector.load %arg12[%c1_107, %c160_108] : memref<2x992xf32, #tpu.memory_space<vmem>>, vector<1x32xf32>
    tpu.vector_store %arg12[%c1_107, %c160_108], %132 {strides = array<i32>} : memref<2x992xf32, #tpu.memory_space<vmem>>, vector<1x32xf32>,
    %134 = vector.extract_strided_slice %121 {offsets = [6, 0], sizes = [1, 32], strides = [1, 1]} : vector<31x32xf32> to vector<1x32xf32>
    %c1_109 = arith.constant 1 : index
    %c192_110 = arith.constant 192 : index
    %135 = vector.load %arg12[%c1_109, %c192_110] : memref<2x992xf32, #tpu.memory_space<vmem>>, vector<1x32xf32>
    tpu.vector_store %arg12[%c1_109, %c192_110], %134 {strides = array<i32>} : memref<2x992xf32, #tpu.memory_space<vmem>>, vector<1x32xf32>,
    %136 = vector.extract_strided_slice %121 {offsets = [7, 0], sizes = [1, 32], strides = [1, 1]} : vector<31x32xf32> to vector<1x32xf32>
    %c1_111 = arith.constant 1 : index
    %c224_112 = arith.constant 224 : index
    %137 = vector.load %arg12[%c1_111, %c224_112] : memref<2x992xf32, #tpu.memory_space<vmem>>, vector<1x32xf32>
    tpu.vector_store %arg12[%c1_111, %c224_112], %136 {strides = array<i32>} : memref<2x992xf32, #tpu.memory_space<vmem>>, vector<1x32xf32>,
    %138 = vector.extract_strided_slice %121 {offsets = [8, 0], sizes = [1, 32], strides = [1, 1]} : vector<31x32xf32> to vector<1x32xf32>
    %c1_113 = arith.constant 1 : index
    %c256_114 = arith.constant 256 : index
    %139 = vector.load %arg12[%c1_113, %c256_114] : memref<2x992xf32, #tpu.memory_space<vmem>>, vector<1x32xf32>
    tpu.vector_store %arg12[%c1_113, %c256_114], %138 {strides = array<i32>} : memref<2x992xf32, #tpu.memory_space<vmem>>, vector<1x32xf32>,
    %140 = vector.extract_strided_slice %121 {offsets = [9, 0], sizes = [1, 32], strides = [1, 1]} : vector<31x32xf32> to vector<1x32xf32>
    %c1_115 = arith.constant 1 : index
    %c288_116 = arith.constant 288 : index
    %141 = vector.load %arg12[%c1_115, %c288_116] : memref<2x992xf32, #tpu.memory_space<vmem>>, vector<1x32xf32>
    tpu.vector_store %arg12[%c1_115, %c288_116], %140 {strides = array<i32>} : memref<2x992xf32, #tpu.memory_space<vmem>>, vector<1x32xf32>,
    %142 = vector.extract_strided_slice %121 {offsets = [10, 0], sizes = [1, 32], strides = [1, 1]} : vector<31x32xf32> to vector<1x32xf32>
    %c1_117 = arith.constant 1 : index
    %c320_118 = arith.constant 320 : index
    %143 = vector.load %arg12[%c1_117, %c320_118] : memref<2x992xf32, #tpu.memory_space<vmem>>, vector<1x32xf32>
    tpu.vector_store %arg12[%c1_117, %c320_118], %142 {strides = array<i32>} : memref<2x992xf32, #tpu.memory_space<vmem>>, vector<1x32xf32>,
    %144 = vector.extract_strided_slice %121 {offsets = [11, 0], sizes = [1, 32], strides = [1, 1]} : vector<31x32xf32> to vector<1x32xf32>
    %c1_119 = arith.constant 1 : index
    %c352_120 = arith.constant 352 : index
    %145 = vector.load %arg12[%c1_119, %c352_120] : memref<2x992xf32, #tpu.memory_space<vmem>>, vector<1x32xf32>
    tpu.vector_store %arg12[%c1_119, %c352_120], %144 {strides = array<i32>} : memref<2x992xf32, #tpu.memory_space<vmem>>, vector<1x32xf32>,
    %146 = vector.extract_strided_slice %121 {offsets = [12, 0], sizes = [1, 32], strides = [1, 1]} : vector<31x32xf32> to vector<1x32xf32>
    %c1_121 = arith.constant 1 : index
    %c384_122 = arith.constant 384 : index
    %147 = vector.load %arg12[%c1_121, %c384_122] : memref<2x992xf32, #tpu.memory_space<vmem>>, vector<1x32xf32>
    tpu.vector_store %arg12[%c1_121, %c384_122], %146 {strides = array<i32>} : memref<2x992xf32, #tpu.memory_space<vmem>>, vector<1x32xf32>,
    %148 = vector.extract_strided_slice %121 {offsets = [13, 0], sizes = [1, 32], strides = [1, 1]} : vector<31x32xf32> to vector<1x32xf32>
    %c1_123 = arith.constant 1 : index
    %c416_124 = arith.constant 416 : index
    %149 = vector.load %arg12[%c1_123, %c416_124] : memref<2x992xf32, #tpu.memory_space<vmem>>, vector<1x32xf32>
    tpu.vector_store %arg12[%c1_123, %c416_124], %148 {strides = array<i32>} : memref<2x992xf32, #tpu.memory_space<vmem>>, vector<1x32xf32>,
    %150 = vector.extract_strided_slice %121 {offsets = [14, 0], sizes = [1, 32], strides = [1, 1]} : vector<31x32xf32> to vector<1x32xf32>
    %c1_125 = arith.constant 1 : index
    %c448_126 = arith.constant 448 : index
    %151 = vector.load %arg12[%c1_125, %c448_126] : memref<2x992xf32, #tpu.memory_space<vmem>>, vector<1x32xf32>
    tpu.vector_store %arg12[%c1_125, %c448_126], %150 {strides = array<i32>} : memref<2x992xf32, #tpu.memory_space<vmem>>, vector<1x32xf32>,
    %152 = vector.extract_strided_slice %121 {offsets = [15, 0], sizes = [1, 32], strides = [1, 1]} : vector<31x32xf32> to vector<1x32xf32>
    %c1_127 = arith.constant 1 : index
    %c480_128 = arith.constant 480 : index
    %153 = vector.load %arg12[%c1_127, %c480_128] : memref<2x992xf32, #tpu.memory_space<vmem>>, vector<1x32xf32>
    tpu.vector_store %arg12[%c1_127, %c480_128], %152 {strides = array<i32>} : memref<2x992xf32, #tpu.memory_space<vmem>>, vector<1x32xf32>,
    %154 = vector.extract_strided_slice %121 {offsets = [16, 0], sizes = [1, 32], strides = [1, 1]} : vector<31x32xf32> to vector<1x32xf32>
    %c1_129 = arith.constant 1 : index
    %c512_130 = arith.constant 512 : index
    %155 = vector.load %arg12[%c1_129, %c512_130] : memref<2x992xf32, #tpu.memory_space<vmem>>, vector<1x32xf32>
    tpu.vector_store %arg12[%c1_129, %c512_130], %154 {strides = array<i32>} : memref<2x992xf32, #tpu.memory_space<vmem>>, vector<1x32xf32>,
    %156 = vector.extract_strided_slice %121 {offsets = [17, 0], sizes = [1, 32], strides = [1, 1]} : vector<31x32xf32> to vector<1x32xf32>
    %c1_131 = arith.constant 1 : index
    %c544_132 = arith.constant 544 : index
    %157 = vector.load %arg12[%c1_131, %c544_132] : memref<2x992xf32, #tpu.memory_space<vmem>>, vector<1x32xf32>
    tpu.vector_store %arg12[%c1_131, %c544_132], %156 {strides = array<i32>} : memref<2x992xf32, #tpu.memory_space<vmem>>, vector<1x32xf32>,
    %158 = vector.extract_strided_slice %121 {offsets = [18, 0], sizes = [1, 32], strides = [1, 1]} : vector<31x32xf32> to vector<1x32xf32>
    %c1_133 = arith.constant 1 : index
    %c576_134 = arith.constant 576 : index
    %159 = vector.load %arg12[%c1_133, %c576_134] : memref<2x992xf32, #tpu.memory_space<vmem>>, vector<1x32xf32>
    tpu.vector_store %arg12[%c1_133, %c576_134], %158 {strides = array<i32>} : memref<2x992xf32, #tpu.memory_space<vmem>>, vector<1x32xf32>,
    %160 = vector.extract_strided_slice %121 {offsets = [19, 0], sizes = [1, 32], strides = [1, 1]} : vector<31x32xf32> to vector<1x32xf32>
    %c1_135 = arith.constant 1 : index
    %c608_136 = arith.constant 608 : index
    %161 = vector.load %arg12[%c1_135, %c608_136] : memref<2x992xf32, #tpu.memory_space<vmem>>, vector<1x32xf32>
    tpu.vector_store %arg12[%c1_135, %c608_136], %160 {strides = array<i32>} : memref<2x992xf32, #tpu.memory_space<vmem>>, vector<1x32xf32>,
    %162 = vector.extract_strided_slice %121 {offsets = [20, 0], sizes = [1, 32], strides = [1, 1]} : vector<31x32xf32> to vector<1x32xf32>
    %c1_137 = arith.constant 1 : index
    %c640_138 = arith.constant 640 : index
    %163 = vector.load %arg12[%c1_137, %c640_138] : memref<2x992xf32, #tpu.memory_space<vmem>>, vector<1x32xf32>
    tpu.vector_store %arg12[%c1_137, %c640_138], %162 {strides = array<i32>} : memref<2x992xf32, #tpu.memory_space<vmem>>, vector<1x32xf32>,
    %164 = vector.extract_strided_slice %121 {offsets = [21, 0], sizes = [1, 32], strides = [1, 1]} : vector<31x32xf32> to vector<1x32xf32>
    %c1_139 = arith.constant 1 : index
    %c672_140 = arith.constant 672 : index
    %165 = vector.load %arg12[%c1_139, %c672_140] : memref<2x992xf32, #tpu.memory_space<vmem>>, vector<1x32xf32>
    tpu.vector_store %arg12[%c1_139, %c672_140], %164 {strides = array<i32>} : memref<2x992xf32, #tpu.memory_space<vmem>>, vector<1x32xf32>,
    %166 = vector.extract_strided_slice %121 {offsets = [22, 0], sizes = [1, 32], strides = [1, 1]} : vector<31x32xf32> to vector<1x32xf32>
    %c1_141 = arith.constant 1 : index
    %c704_142 = arith.constant 704 : index
    %167 = vector.load %arg12[%c1_141, %c704_142] : memref<2x992xf32, #tpu.memory_space<vmem>>, vector<1x32xf32>
    tpu.vector_store %arg12[%c1_141, %c704_142], %166 {strides = array<i32>} : memref<2x992xf32, #tpu.memory_space<vmem>>, vector<1x32xf32>,
    %168 = vector.extract_strided_slice %121 {offsets = [23, 0], sizes = [1, 32], strides = [1, 1]} : vector<31x32xf32> to vector<1x32xf32>
    %c1_143 = arith.constant 1 : index
    %c736_144 = arith.constant 736 : index
    %169 = vector.load %arg12[%c1_143, %c736_144] : memref<2x992xf32, #tpu.memory_space<vmem>>, vector<1x32xf32>
    tpu.vector_store %arg12[%c1_143, %c736_144], %168 {strides = array<i32>} : memref<2x992xf32, #tpu.memory_space<vmem>>, vector<1x32xf32>,
    %170 = vector.extract_strided_slice %121 {offsets = [24, 0], sizes = [1, 32], strides = [1, 1]} : vector<31x32xf32> to vector<1x32xf32>
    %c1_145 = arith.constant 1 : index
    %c768_146 = arith.constant 768 : index
    %171 = vector.load %arg12[%c1_145, %c768_146] : memref<2x992xf32, #tpu.memory_space<vmem>>, vector<1x32xf32>
    tpu.vector_store %arg12[%c1_145, %c768_146], %170 {strides = array<i32>} : memref<2x992xf32, #tpu.memory_space<vmem>>, vector<1x32xf32>,
    %172 = vector.extract_strided_slice %121 {offsets = [25, 0], sizes = [1, 32], strides = [1, 1]} : vector<31x32xf32> to vector<1x32xf32>
    %c1_147 = arith.constant 1 : index
    %c800_148 = arith.constant 800 : index
    %173 = vector.load %arg12[%c1_147, %c800_148] : memref<2x992xf32, #tpu.memory_space<vmem>>, vector<1x32xf32>
    tpu.vector_store %arg12[%c1_147, %c800_148], %172 {strides = array<i32>} : memref<2x992xf32, #tpu.memory_space<vmem>>, vector<1x32xf32>,
    %174 = vector.extract_strided_slice %121 {offsets = [26, 0], sizes = [1, 32], strides = [1, 1]} : vector<31x32xf32> to vector<1x32xf32>
    %c1_149 = arith.constant 1 : index
    %c832_150 = arith.constant 832 : index
    %175 = vector.load %arg12[%c1_149, %c832_150] : memref<2x992xf32, #tpu.memory_space<vmem>>, vector<1x32xf32>
    tpu.vector_store %arg12[%c1_149, %c832_150], %174 {strides = array<i32>} : memref<2x992xf32, #tpu.memory_space<vmem>>, vector<1x32xf32>,
    %176 = vector.extract_strided_slice %121 {offsets = [27, 0], sizes = [1, 32], strides = [1, 1]} : vector<31x32xf32> to vector<1x32xf32>
    %c1_151 = arith.constant 1 : index
    %c864_152 = arith.constant 864 : index
    %177 = vector.load %arg12[%c1_151, %c864_152] : memref<2x992xf32, #tpu.memory_space<vmem>>, vector<1x32xf32>
    tpu.vector_store %arg12[%c1_151, %c864_152], %176 {strides = array<i32>} : memref<2x992xf32, #tpu.memory_space<vmem>>, vector<1x32xf32>,
    %178 = vector.extract_strided_slice %121 {offsets = [28, 0], sizes = [1, 32], strides = [1, 1]} : vector<31x32xf32> to vector<1x32xf32>
    %c1_153 = arith.constant 1 : index
    %c896_154 = arith.constant 896 : index
    %179 = vector.load %arg12[%c1_153, %c896_154] : memref<2x992xf32, #tpu.memory_space<vmem>>, vector<1x32xf32>
    tpu.vector_store %arg12[%c1_153, %c896_154], %178 {strides = array<i32>} : memref<2x992xf32, #tpu.memory_space<vmem>>, vector<1x32xf32>,
    %180 = vector.extract_strided_slice %121 {offsets = [29, 0], sizes = [1, 32], strides = [1, 1]} : vector<31x32xf32> to vector<1x32xf32>
    %c1_155 = arith.constant 1 : index
    %c928_156 = arith.constant 928 : index
    %181 = vector.load %arg12[%c1_155, %c928_156] : memref<2x992xf32, #tpu.memory_space<vmem>>, vector<1x32xf32>
    tpu.vector_store %arg12[%c1_155, %c928_156], %180 {strides = array<i32>} : memref<2x992xf32, #tpu.memory_space<vmem>>, vector<1x32xf32>,
    %182 = vector.extract_strided_slice %121 {offsets = [30, 0], sizes = [1, 32], strides = [1, 1]} : vector<31x32xf32> to vector<1x32xf32>
    %c1_157 = arith.constant 1 : index
    %c960_158 = arith.constant 960 : index
    %183 = vector.load %arg12[%c1_157, %c960_158] : memref<2x992xf32, #tpu.memory_space<vmem>>, vector<1x32xf32>
    tpu.vector_store %arg12[%c1_157, %c960_158], %182 {strides = array<i32>} : memref<2x992xf32, #tpu.memory_space<vmem>>, vector<1x32xf32>,
    %c0_159 = arith.constant 0 : index
    %c0_160 = arith.constant 0 : index
    %184 = vector.load %arg12[%c0_159, %c0_160] : memref<2x992xf32, #tpu.memory_space<vmem>>, vector<2x992xf32>
    %c0_161 = arith.constant 0 : index
    %c0_162 = arith.constant 0 : index
    %185 = vector.load %arg5[%c0_161, %c0_162] : memref<992x128xf32, #tpu.memory_space<vmem>>, vector<992x128xf32>
    %cst_163 = arith.constant dense<0.000000e+00> : vector<2x128xf32>
    %186 = tpu.matmul %184, %185, %cst_163 {dimension_numbers = #tpu.dot_dimension_numbers<[1], [0], [0], [1], [0, 0, 1, 1], [], []>} : vector<2x992xf32>, vector<992x128xf32>, vector<2x128xf32> -> vector<2x128xf32>
    %c0_164 = arith.constant 0 : index
    %c0_165 = arith.constant 0 : index
    %187 = vector.load %arg6[%c0_164, %c0_165] : memref<1x128xf32, #tpu.memory_space<vmem>>, vector<1x128xf32>
    %188 = vector.broadcast %187 : vector<1x128xf32> to vector<2x128xf32>
    %189 = arith.addf %186, %188 : vector<2x128xf32>
    %cst_166 = arith.constant 0.000000e+00 : f32
    %190 = vector.broadcast %cst_166 : f32 to vector<2x128xf32>
    %191 = arith.maximumf %189, %190 : vector<2x128xf32>
    %c0_167 = arith.constant 0 : index
    %c0_168 = arith.constant 0 : index
    %192 = vector.load %arg7[%c0_167, %c0_168] : memref<128x4xf32, #tpu.memory_space<vmem>>, vector<128x4xf32>
    %cst_169 = arith.constant dense<0.000000e+00> : vector<2x4xf32>
    %193 = tpu.matmul %191, %192, %cst_169 {dimension_numbers = #tpu.dot_dimension_numbers<[1], [0], [0], [1], [0, 0, 1, 1], [], []>} : vector<2x128xf32>, vector<128x4xf32>, vector<2x4xf32> -> vector<2x4xf32>
    %c0_170 = arith.constant 0 : index
    %c0_171 = arith.constant 0 : index
    %194 = vector.load %arg8[%c0_170, %c0_171] : memref<1x4xf32, #tpu.memory_space<vmem>>, vector<1x4xf32>
    %195 = vector.broadcast %194 : vector<1x4xf32> to vector<2x4xf32>
    %196 = arith.addf %193, %195 : vector<2x4xf32>
    %c0_172 = arith.constant 0 : index
    %c0_173 = arith.constant 0 : index
    %197 = vector.load %arg9[%c0_172, %c0_173] : memref<2x4xf32, #tpu.memory_space<vmem>>, vector<2x4xf32>
    tpu.vector_store %arg9[%c0_172, %c0_173], %196 {strides = array<i32>} : memref<2x4xf32, #tpu.memory_space<vmem>>, vector<2x4xf32>,
    return
  }
}

</mosaic_0001>

<llo_original>
// kernel: onedcnn_forward.1
$region0: #{onedcnn_forward.1}
  #allocation0 [shape = 'u32[]', space=smem, size = 0x4, offset = 0x4, fixed_abs, tag = 'smem constant byte address 0x4 - core index']
  #allocation1 [shape = 'u32[72,128]{1,0:T(1,128)}', space=vmem, size = 0x9000, scoped, tag = 'internal scratch']
  #allocation2 [shape = 'f32[140,24]{1,0:T(8,128)}', space=vmem, size = 0x12000, scoped, tag = 'scratch operand']
  #allocation3 [shape = 'f32[78,48]{1,0:T(8,128)}', space=vmem, size = 0xa000, scoped, tag = 'scratch operand']
  #allocation4 [shape = 'f32[2,992]{1,0:T(2,128)}', space=vmem, size = 0x2000, scoped, tag = 'scratch operand']
  %s0 = inlined_call_operand.vmem [shape: f32[2,124,8], index: 0, kind: input, shape index: {}]
  %s1 = inlined_call_operand.vmem [shape: f32[24,16], index: 1, kind: input, shape index: {}]
  %s2 = inlined_call_operand.vmem [shape: f32[1,16], index: 2, kind: input, shape index: {}]
  %s3 = inlined_call_operand.vmem [shape: f32[48,32], index: 3, kind: input, shape index: {}]
  %s4 = inlined_call_operand.vmem [shape: f32[1,32], index: 4, kind: input, shape index: {}]
  %s5 = inlined_call_operand.hbm [shape: f32[992,128], index: 5, kind: input, shape index: {}]
  %s6 = inlined_call_operand.vmem [shape: f32[1,128], index: 6, kind: input, shape index: {}]
  %s7 = inlined_call_operand.vmem [shape: f32[128,4], index: 7, kind: input, shape index: {}]
  %s8 = inlined_call_operand.vmem [shape: f32[1,4], index: 8, kind: input, shape index: {}]
  %s9 = inlined_call_operand.hbm [shape: f32[2,4], index: 9, kind: output, shape index: {}]
  %s10 = sld [smem:[#allocation0]]
  $region50: #{onedcnn_forward.1} parent=0
    _
  %s12 = ssub.s32 1, %s10
  %s13 = scalar_select 0, %s12, %s10
  $region1: #{onedcnn_forward.1} parent=0
    #allocation5 [shape = 'u8[507904]{0}', space=vmem, size = 0x7c000, scoped, tag = 'input window, operand 5, single buffered']
    #allocation6 [shape = 's32[1]{0}', space=sflag, size = 0x4, scoped, tag = 'scoped memory for onedcnn_forward.1']
    #allocation7 [shape = 's32[1]{0}', space=sflag, size = 0x4, scoped, tag = 'scoped memory for onedcnn_forward.1']
    #allocation8 [shape = 'u8[1024]{0}', space=vmem, size = 0x400, scoped, tag = 'output window, operand 0, single buffered']
    %14 = vsyncpa [#allocation6], 0
    %15 = vsyncpa [#allocation7], 0
    // Predicated region
    $region2: #{onedcnn_forward.1} parent=1 // pred_check
      _
    $region3: #{onedcnn_forward.1} parent=1 // pred_check_branch
      %17 = sbr.rel (0) target = $region5
    $region4: #{onedcnn_forward.1} parent=1 // pred_region
      _
    $region5: #{onedcnn_forward.1} parent=1 // pred_fallthru
      _
    // Predicated region
    $region6: #{onedcnn_forward.1} parent=1 // pred_check
      _
    $region7: #{onedcnn_forward.1} parent=1 // pred_check_branch
      %19 = sbr.rel (0) target = $region9
    $region8: #{onedcnn_forward.1} parent=1 // pred_region
      _
    $region9: #{onedcnn_forward.1} parent=1 // pred_fallthru
      _
    // Predicated region
    $region10: #{onedcnn_forward.1} parent=1 // pred_check
      _
    $region11: #{onedcnn_forward.1} parent=1 // pred_check_branch
      %21 = sbr.rel (0) target = $region13
    $region12: #{onedcnn_forward.1} parent=1 // pred_region
      _
    $region13: #{onedcnn_forward.1} parent=1 // pred_fallthru
      _
    // Predicated region
    $region14: #{onedcnn_forward.1} parent=1 // pred_check
      _
    $region15: #{onedcnn_forward.1} parent=1 // pred_check_branch
      %23 = sbr.rel (0) target = $region17
    $region16: #{onedcnn_forward.1} parent=1 // pred_region
      _
    $region17: #{onedcnn_forward.1} parent=1 // pred_fallthru
      _
    // Predicated region
    $region18: #{onedcnn_forward.1} parent=1 // pred_check
      _
    $region19: #{onedcnn_forward.1} parent=1 // pred_check_branch
      %25 = sbr.rel (0) target = $region21
    $region20: #{onedcnn_forward.1} parent=1 // pred_region
      _
    $region21: #{onedcnn_forward.1} parent=1 // pred_fallthru
      _
    // Predicated region
    $region22: #{onedcnn_forward.1} parent=1 // pred_check
      _
    $region23: #{onedcnn_forward.1} parent=1 // pred_check_branch
      %27 = sbr.rel (0) target = $region25
    $region24: #{onedcnn_forward.1} parent=1 // pred_region
      %29 = vsyncadd [#allocation6], 0
      %s30 = sshll.u32 %s5, 4
      %s31 = int_to_ptr.hbm [resolvable:$true] %s30
      %s32 = sshll.u32 [#allocation5], 4
      %s33 = int_to_ptr.vmem [resolvable:$true] %s32
      %38 = dma.hbm_to_vmem [thread:$0]  %s31, 15872, %s33, [#allocation6], 128, 128, 8
    $region25: #{onedcnn_forward.1} parent=1 // pred_fallthru
      _
    // Predicated region
    $region26: #{onedcnn_forward.1} parent=1 // pred_check
      _
    $region27: #{onedcnn_forward.1} parent=1 // pred_check_branch
      %40 = sbr.rel (0) target = $region29
    $region28: #{onedcnn_forward.1} parent=1 // pred_region
      _
    $region29: #{onedcnn_forward.1} parent=1 // pred_fallthru
      _
    // Predicated region
    $region30: #{onedcnn_forward.1} parent=1 // pred_check
      _
    $region31: #{onedcnn_forward.1} parent=1 // pred_check_branch
      %42 = sbr.rel (0) target = $region33
    $region32: #{onedcnn_forward.1} parent=1 // pred_region
      _
    $region33: #{onedcnn_forward.1} parent=1 // pred_fallthru
      _
    // Predicated region
    $region34: #{onedcnn_forward.1} parent=1 // pred_check
      _
    $region35: #{onedcnn_forward.1} parent=1 // pred_check_branch
      %44 = sbr.rel (0) target = $region37
    $region36: #{onedcnn_forward.1} parent=1 // pred_region
      _
    $region37: #{onedcnn_forward.1} parent=1 // pred_fallthru
      _
    // Predicated region
    $region38: #{onedcnn_forward.1} parent=1 // pred_check
      _
    $region39: #{onedcnn_forward.1} parent=1 // pred_check_branch
      %46 = sbr.rel (0) target = $region41
    $region40: #{onedcnn_forward.1} parent=1 // pred_region
      %48 = dma.done [#allocation6], 15872
    $region41: #{onedcnn_forward.1} parent=1 // pred_fallthru
      _
    %vm49 = vcmask 195584
    %50 = vst.msk [vmem:[#allocation2] sm:$0xff] %vm49, 0.0
    %51 = vst.msk [vmem:[#allocation2 + $0x8] sm:$0xff] %vm49, 0.0
    %52 = vst.msk [vmem:[#allocation2 + $0x10] sm:$0xff] %vm49, 0.0
    %53 = vst.msk [vmem:[#allocation2 + $0x18] sm:$0xff] %vm49, 0.0
    %54 = vst.msk [vmem:[#allocation2 + $0x20] sm:$0xff] %vm49, 0.0
    %55 = vst.msk [vmem:[#allocation2 + $0x28] sm:$0xff] %vm49, 0.0
    %56 = vst.msk [vmem:[#allocation2 + $0x30] sm:$0xff] %vm49, 0.0
    %57 = vst.msk [vmem:[#allocation2 + $0x38] sm:$0xff] %vm49, 0.0
    %58 = vst.msk [vmem:[#allocation2 + $0x40] sm:$0xff] %vm49, 0.0
    %59 = vst.msk [vmem:[#allocation2 + $0x48] sm:$0xff] %vm49, 0.0
    %60 = vst.msk [vmem:[#allocation2 + $0x50] sm:$0xff] %vm49, 0.0
    %61 = vst.msk [vmem:[#allocation2 + $0x58] sm:$0xff] %vm49, 0.0
    %62 = vst.msk [vmem:[#allocation2 + $0x60] sm:$0xff] %vm49, 0.0
    %63 = vst.msk [vmem:[#allocation2 + $0x68] sm:$0xff] %vm49, 0.0
    %64 = vst.msk [vmem:[#allocation2 + $0x70] sm:$0xff] %vm49, 0.0
    %65 = vst.msk [vmem:[#allocation2 + $0x78] sm:$0xff] %vm49, 0.0
    %66 = vst.msk [vmem:[#allocation2 + $0x80] sm:$0xff] %vm49, 0.0
    %vm67 = vcmask 191488
    %68 = vst.msk [vmem:[#allocation2 + $0x88] sm:$0xf] %vm67, 0.0
    %vm69 = vcmask 392192
    %70 = vst.msk [vmem:[#allocation3] sm:$0xff] %vm69, 0.0
    %71 = vst.msk [vmem:[#allocation3 + $0x8] sm:$0xff] %vm69, 0.0
    %72 = vst.msk [vmem:[#allocation3 + $0x10] sm:$0xff] %vm69, 0.0
    %73 = vst.msk [vmem:[#allocation3 + $0x18] sm:$0xff] %vm69, 0.0
    %74 = vst.msk [vmem:[#allocation3 + $0x20] sm:$0xff] %vm69, 0.0
    %75 = vst.msk [vmem:[#allocation3 + $0x28] sm:$0xff] %vm69, 0.0
    %76 = vst.msk [vmem:[#allocation3 + $0x30] sm:$0xff] %vm69, 0.0
    %77 = vst.msk [vmem:[#allocation3 + $0x38] sm:$0xff] %vm69, 0.0
    %78 = vst.msk [vmem:[#allocation3 + $0x40] sm:$0xff] %vm69, 0.0
    %vm79 = vcmask 390144
    %80 = vst.msk [vmem:[#allocation3 + $0x48] sm:$0x3f] %vm79, 0.0
    %v81 = vld [vmem:[%s1] sm:$0xff]
    %v82 = vld [vmem:[%s1 + $0x8] sm:$0xff]
    %v83 = vld [vmem:[%s1 + $0x10] sm:$0xff]
    %v84 = vld [vmem:[%s2] sm:$0x1]
    %v85 = vld [vmem:[%s3] sm:$0xff]
    %v86 = vld [vmem:[%s3 + $0x8] sm:$0xff]
    %v87 = vld [vmem:[%s3 + $0x10] sm:$0xff]
    %v88 = vld [vmem:[%s3 + $0x18] sm:$0xff]
    %v89 = vld [vmem:[%s3 + $0x20] sm:$0xff]
    %v90 = vld [vmem:[%s3 + $0x28] sm:$0xff]
    %v91 = vld [vmem:[%s4] sm:$0x1]
    %v92 = vld [vmem:[%s0] sm:$0xff]
    %v93 = vld [vmem:[%s0 + $0x8] sm:$0xff]
    %v94 = vld [vmem:[%s0 + $0x10] sm:$0xff]
    %v95 = vld [vmem:[%s0 + $0x18] sm:$0xff]
    %v96 = vld [vmem:[%s0 + $0x20] sm:$0xff]
    %v97 = vld [vmem:[%s0 + $0x28] sm:$0xff]
    %v98 = vld [vmem:[%s0 + $0x30] sm:$0xff]
    %v99 = vld [vmem:[%s0 + $0x38] sm:$0xff]
    %v100 = vld [vmem:[%s0 + $0x40] sm:$0xff]
    %v101 = vld [vmem:[%s0 + $0x48] sm:$0xff]
    %v102 = vld [vmem:[%s0 + $0x50] sm:$0xff]
    %v103 = vld [vmem:[%s0 + $0x58] sm:$0xff]
    %v104 = vld [vmem:[%s0 + $0x60] sm:$0xff]
    %v105 = vld [vmem:[%s0 + $0x68] sm:$0xff]
    %v106 = vld [vmem:[%s0 + $0x70] sm:$0xff]
    %v107 = vld [vmem:[%s0 + $0x78] sm:$0xf]
    %vm108 = vcmask 64512
    %109 = vst.msk [vmem:[#allocation2 + $0x9] sm:$0xff] %vm108, %v92
    %110 = vst.msk [vmem:[#allocation2 + $0x11] sm:$0xff] %vm108, %v93
    %111 = vst.msk [vmem:[#allocation2 + $0x19] sm:$0xff] %vm108, %v94
    %112 = vst.msk [vmem:[#allocation2 + $0x21] sm:$0xff] %vm108, %v95
    %113 = vst.msk [vmem:[#allocation2 + $0x29] sm:$0xff] %vm108, %v96
    %114 = vst.msk [vmem:[#allocation2 + $0x31] sm:$0xff] %vm108, %v97
    %115 = vst.msk [vmem:[#allocation2 + $0x39] sm:$0xff] %vm108, %v98
    %116 = vst.msk [vmem:[#allocation2 + $0x41] sm:$0xff] %vm108, %v99
    %117 = vst.msk [vmem:[#allocation2 + $0x49] sm:$0xff] %vm108, %v100
    %118 = vst.msk [vmem:[#allocation2 + $0x51] sm:$0xff] %vm108, %v101
    %119 = vst.msk [vmem:[#allocation2 + $0x59] sm:$0xff] %vm108, %v102
    %120 = vst.msk [vmem:[#allocation2 + $0x61] sm:$0xff] %vm108, %v103
    %121 = vst.msk [vmem:[#allocation2 + $0x69] sm:$0xff] %vm108, %v104
    %122 = vst.msk [vmem:[#allocation2 + $0x71] sm:$0xff] %vm108, %v105
    %123 = vst.msk [vmem:[#allocation2 + $0x79] sm:$0xff] %vm108, %v106
    %vm124 = vcmask 60416
    %125 = vst.msk [vmem:[#allocation2 + $0x81] sm:$0xf] %vm124, %v107
    %142 = vrot.lane.b32.xlu0 %v92, 8
    %v143 = vpop.permute.xlu0 %142
    %144 = vrot.lane.b32.xlu0 %v93, 8
    %v145 = vpop.permute.xlu0 %144
    %146 = vrot.lane.b32.xlu0 %v94, 8
    %v147 = vpop.permute.xlu0 %146
    %148 = vrot.lane.b32.xlu0 %v95, 8
    %v149 = vpop.permute.xlu0 %148
    %150 = vrot.lane.b32.xlu0 %v96, 8
    %v151 = vpop.permute.xlu0 %150
    %152 = vrot.lane.b32.xlu0 %v97, 8
    %v153 = vpop.permute.xlu0 %152
    %154 = vrot.lane.b32.xlu0 %v98, 8
    %v155 = vpop.permute.xlu0 %154
    %156 = vrot.lane.b32.xlu0 %v99, 8
    %v157 = vpop.permute.xlu0 %156
    %158 = vrot.lane.b32.xlu0 %v100, 8
    %v159 = vpop.permute.xlu0 %158
    %160 = vrot.lane.b32.xlu0 %v101, 8
    %v161 = vpop.permute.xlu0 %160
    %162 = vrot.lane.b32.xlu0 %v102, 8
    %v163 = vpop.permute.xlu0 %162
    %164 = vrot.lane.b32.xlu0 %v103, 8
    %v165 = vpop.permute.xlu0 %164
    %166 = vrot.lane.b32.xlu0 %v104, 8
    %v167 = vpop.permute.xlu0 %166
    %168 = vrot.lane.b32.xlu0 %v105, 8
    %v169 = vpop.permute.xlu0 %168
    %170 = vrot.lane.b32.xlu0 %v106, 8
    %v171 = vpop.permute.xlu0 %170
    %172 = vrot.lane.b32.xlu0 %v107, 8
    %v173 = vpop.permute.xlu0 %172
    %vm190 = vcmask 130112
    %191 = vst.msk [vmem:[#allocation2 + $0x8] sm:$0xff] %vm190, %v143
    %192 = vst.msk [vmem:[#allocation2 + $0x10] sm:$0xff] %vm190, %v145
    %193 = vst.msk [vmem:[#allocation2 + $0x18] sm:$0xff] %vm190, %v147
    %194 = vst.msk [vmem:[#allocation2 + $0x20] sm:$0xff] %vm190, %v149
    %195 = vst.msk [vmem:[#allocation2 + $0x28] sm:$0xff] %vm190, %v151
    %196 = vst.msk [vmem:[#allocation2 + $0x30] sm:$0xff] %vm190, %v153
    %197 = vst.msk [vmem:[#allocation2 + $0x38] sm:$0xff] %vm190, %v155
    %198 = vst.msk [vmem:[#allocation2 + $0x40] sm:$0xff] %vm190, %v157
    %199 = vst.msk [vmem:[#allocation2 + $0x48] sm:$0xff] %vm190, %v159
    %200 = vst.msk [vmem:[#allocation2 + $0x50] sm:$0xff] %vm190, %v161
    %201 = vst.msk [vmem:[#allocation2 + $0x58] sm:$0xff] %vm190, %v163
    %202 = vst.msk [vmem:[#allocation2 + $0x60] sm:$0xff] %vm190, %v165
    %203 = vst.msk [vmem:[#allocation2 + $0x68] sm:$0xff] %vm190, %v167
    %204 = vst.msk [vmem:[#allocation2 + $0x70] sm:$0xff] %vm190, %v169
    %205 = vst.msk [vmem:[#allocation2 + $0x78] sm:$0xff] %vm190, %v171
    %vm206 = vcmask 126016
    %207 = vst.msk [vmem:[#allocation2 + $0x80] sm:$0xf] %vm206, %v173
    %208 = vrot.lane.b32.xlu0 %v92, 16
    %v209 = vpop.permute.xlu0 %208
    %210 = vrot.lane.b32.xlu0 %v93, 16
    %v211 = vpop.permute.xlu0 %210
    %212 = vrot.lane.b32.xlu0 %v94, 16
    %v213 = vpop.permute.xlu0 %212
    %214 = vrot.lane.b32.xlu0 %v95, 16
    %v215 = vpop.permute.xlu0 %214
    %216 = vrot.lane.b32.xlu0 %v96, 16
    %v217 = vpop.permute.xlu0 %216
    %218 = vrot.lane.b32.xlu0 %v97, 16
    %v219 = vpop.permute.xlu0 %218
    %220 = vrot.lane.b32.xlu0 %v98, 16
    %v221 = vpop.permute.xlu0 %220
    %222 = vrot.lane.b32.xlu0 %v99, 16
    %v223 = vpop.permute.xlu0 %222
    %224 = vrot.lane.b32.xlu0 %v100, 16
    %v225 = vpop.permute.xlu0 %224
    %226 = vrot.lane.b32.xlu0 %v101, 16
    %v227 = vpop.permute.xlu0 %226
    %228 = vrot.lane.b32.xlu0 %v102, 16
    %v229 = vpop.permute.xlu0 %228
    %230 = vrot.lane.b32.xlu0 %v103, 16
    %v231 = vpop.permute.xlu0 %230
    %232 = vrot.lane.b32.xlu0 %v104, 16
    %v233 = vpop.permute.xlu0 %232
    %234 = vrot.lane.b32.xlu0 %v105, 16
    %v235 = vpop.permute.xlu0 %234
    %236 = vrot.lane.b32.xlu0 %v106, 16
    %v237 = vpop.permute.xlu0 %236
    %238 = vrot.lane.b32.xlu0 %v107, 16
    %v239 = vpop.permute.xlu0 %238
    %vm256 = vcmask 195712
    %257 = vst.msk [vmem:[#allocation2 + $0x7] sm:$0xff] %vm256, %v209
    %258 = vst.msk [vmem:[#allocation2 + $0xf] sm:$0xff] %vm256, %v211
    %259 = vst.msk [vmem:[#allocation2 + $0x17] sm:$0xff] %vm256, %v213
    %260 = vst.msk [vmem:[#allocation2 + $0x1f] sm:$0xff] %vm256, %v215
    %261 = vst.msk [vmem:[#allocation2 + $0x27] sm:$0xff] %vm256, %v217
    %262 = vst.msk [vmem:[#allocation2 + $0x2f] sm:$0xff] %vm256, %v219
    %263 = vst.msk [vmem:[#allocation2 + $0x37] sm:$0xff] %vm256, %v221
    %264 = vst.msk [vmem:[#allocation2 + $0x3f] sm:$0xff] %vm256, %v223
    %265 = vst.msk [vmem:[#allocation2 + $0x47] sm:$0xff] %vm256, %v225
    %266 = vst.msk [vmem:[#allocation2 + $0x4f] sm:$0xff] %vm256, %v227
    %267 = vst.msk [vmem:[#allocation2 + $0x57] sm:$0xff] %vm256, %v229
    %268 = vst.msk [vmem:[#allocation2 + $0x5f] sm:$0xff] %vm256, %v231
    %269 = vst.msk [vmem:[#allocation2 + $0x67] sm:$0xff] %vm256, %v233
    %270 = vst.msk [vmem:[#allocation2 + $0x6f] sm:$0xff] %vm256, %v235
    %271 = vst.msk [vmem:[#allocation2 + $0x77] sm:$0xff] %vm256, %v237
    %vm272 = vcmask 191616
    %273 = vst.msk [vmem:[#allocation2 + $0x7f] sm:$0xf] %vm272, %v239
    %s274 = scalar_lea.vmem [#allocation2], 8
    %v275 = vld [vmem:[%s274] ss:$2 sm:$0xff]
    %s276 = scalar_lea.vmem [#allocation2], 24
    %v277 = vld [vmem:[%s276] ss:$2 sm:$0xff]
    %s278 = scalar_lea.vmem [#allocation2], 40
    %v279 = vld [vmem:[%s278] ss:$2 sm:$0xff]
    %s280 = scalar_lea.vmem [#allocation2], 56
    %v281 = vld [vmem:[%s280] ss:$2 sm:$0xff]
    %s282 = scalar_lea.vmem [#allocation2], 72
    %v283 = vld [vmem:[%s282] ss:$2 sm:$0xff]
    %s284 = scalar_lea.vmem [#allocation2], 88
    %v285 = vld [vmem:[%s284] ss:$2 sm:$0xff]
    %s286 = scalar_lea.vmem [#allocation2], 104
    %v287 = vld [vmem:[%s286] ss:$2 sm:$0xff]
    %s288 = scalar_lea.vmem [#allocation2], 120
    %v289 = vld [vmem:[%s288] ss:$2 sm:$0x3f]
    %s290 = scalar_lea.vmem [#allocation2], 9
    %v291 = vld [vmem:[%s290] ss:$2 sm:$0xff]
    %s292 = scalar_lea.vmem [#allocation2], 25
    %v293 = vld [vmem:[%s292] ss:$2 sm:$0xff]
    %s294 = scalar_lea.vmem [#allocation2], 41
    %v295 = vld [vmem:[%s294] ss:$2 sm:$0xff]
    %s296 = scalar_lea.vmem [#allocation2], 57
    %v297 = vld [vmem:[%s296] ss:$2 sm:$0xff]
    %s298 = scalar_lea.vmem [#allocation2], 73
    %v299 = vld [vmem:[%s298] ss:$2 sm:$0xff]
    %s300 = scalar_lea.vmem [#allocation2], 89
    %v301 = vld [vmem:[%s300] ss:$2 sm:$0xff]
    %s302 = scalar_lea.vmem [#allocation2], 105
    %v303 = vld [vmem:[%s302] ss:$2 sm:$0xff]
    %s304 = scalar_lea.vmem [#allocation2], 121
    %v305 = vld [vmem:[%s304] ss:$2 sm:$0x3f]
    %v307 = vsel %vm49, %v275, 0
    %v310 = vsel %vm49, %v277, 0
    %v313 = vsel %vm49, %v279, 0
    %v316 = vsel %vm49, %v281, 0
    %v319 = vsel %vm49, %v283, 0
    %v322 = vsel %vm49, %v285, 0
    %v325 = vsel %vm49, %v287, 0
    %v328 = vsel %vm49, %v289, 0
    %330 = vmatpush.msra.mxu0 0.0
    %331 = vmatpush.msra.mxu0 0.0
    %332 = vmatpush.msra.mxu0 0.0
    %333 = vmatpush.msra.mxu0 0.0
    %334 = vmatpush.msra.mxu0 0.0
    %335 = vmatpush.msra.mxu0 0.0
    %336 = vmatpush.msra.mxu0 0.0
    %337 = vmatpush.msra.mxu0 0.0
    %338 = vmatpush.msra.mxu0 0.0
    %339 = vmatpush.msra.mxu0 0.0
    %340 = vmatpush.msra.mxu0 0.0
    %341 = vmatpush.msra.mxu0 0.0
    %342 = vmatpush.msra.mxu0 0.0
    %343 = vmatpush.msra.mxu0 %v83
    %344 = vmatpush.msra.mxu0 %v82
    %345 = vmatpush.msra.mxu0 %v81
    %346 = vmatmul.f32.gmra.mxu0 %v307
    %v347 = vpop.f32.mrf.mxu0
    %v348 = vadd.f32 0.0, %v347
    %349 = vmatmul.f32.gmra.mxu0 %v310
    %v350 = vpop.f32.mrf.mxu0
    %v351 = vadd.f32 0.0, %v350
    %352 = vmatmul.f32.gmra.mxu0 %v313
    %v353 = vpop.f32.mrf.mxu0
    %v354 = vadd.f32 0.0, %v353
    %355 = vmatmul.f32.gmra.mxu0 %v316
    %v356 = vpop.f32.mrf.mxu0
    %v357 = vadd.f32 0.0, %v356
    %358 = vmatmul.f32.gmra.mxu0 %v319
    %v359 = vpop.f32.mrf.mxu0
    %v360 = vadd.f32 0.0, %v359
    %361 = vmatmul.f32.gmra.mxu0 %v322
    %v362 = vpop.f32.mrf.mxu0
    %v363 = vadd.f32 0.0, %v362
    %364 = vmatmul.f32.gmra.mxu0 %v325
    %v365 = vpop.f32.mrf.mxu0
    %v366 = vadd.f32 0.0, %v365
    %367 = vmatmul.f32.gmra.mxu0 %v328
    %v368 = vpop.f32.mrf.mxu0
    %v369 = vadd.f32 0.0, %v368
    %370 = vdwg.mxu0
    %v372 = vsel %vm49, %v291, 0
    %v375 = vsel %vm49, %v293, 0
    %v378 = vsel %vm49, %v295, 0
    %v381 = vsel %vm49, %v297, 0
    %v384 = vsel %vm49, %v299, 0
    %v387 = vsel %vm49, %v301, 0
    %v390 = vsel %vm49, %v303, 0
    %v393 = vsel %vm49, %v305, 0
    %395 = vmatpush.msra.mxu0 0.0
    %396 = vmatpush.msra.mxu0 0.0
    %397 = vmatpush.msra.mxu0 0.0
    %398 = vmatpush.msra.mxu0 0.0
    %399 = vmatpush.msra.mxu0 0.0
    %400 = vmatpush.msra.mxu0 0.0
    %401 = vmatpush.msra.mxu0 0.0
    %402 = vmatpush.msra.mxu0 0.0
    %403 = vmatpush.msra.mxu0 0.0
    %404 = vmatpush.msra.mxu0 0.0
    %405 = vmatpush.msra.mxu0 0.0
    %406 = vmatpush.msra.mxu0 0.0
    %407 = vmatpush.msra.mxu0 0.0
    %408 = vmatpush.msra.mxu0 %v83
    %409 = vmatpush.msra.mxu0 %v82
    %410 = vmatpush.msra.mxu0 %v81
    %411 = vmatmul.f32.gmra.mxu0 %v372
    %v412 = vpop.f32.mrf.mxu0
    %v413 = vadd.f32 0.0, %v412
    %414 = vmatmul.f32.gmra.mxu0 %v375
    %v415 = vpop.f32.mrf.mxu0
    %v416 = vadd.f32 0.0, %v415
    %417 = vmatmul.f32.gmra.mxu0 %v378
    %v418 = vpop.f32.mrf.mxu0
    %v419 = vadd.f32 0.0, %v418
    %420 = vmatmul.f32.gmra.mxu0 %v381
    %v421 = vpop.f32.mrf.mxu0
    %v422 = vadd.f32 0.0, %v421
    %423 = vmatmul.f32.gmra.mxu0 %v384
    %v424 = vpop.f32.mrf.mxu0
    %v425 = vadd.f32 0.0, %v424
    %426 = vmatmul.f32.gmra.mxu0 %v387
    %v427 = vpop.f32.mrf.mxu0
    %v428 = vadd.f32 0.0, %v427
    %429 = vmatmul.f32.gmra.mxu0 %v390
    %v430 = vpop.f32.mrf.mxu0
    %v431 = vadd.f32 0.0, %v430
    %432 = vmatmul.f32.gmra.mxu0 %v393
    %v433 = vpop.f32.mrf.mxu0
    %v434 = vadd.f32 0.0, %v433
    %435 = vdwg.mxu0
    %v436 = vmax.f32 %v348, %v413
    %v437 = vmax.f32 %v351, %v416
    %v438 = vmax.f32 %v354, %v419
    %v439 = vmax.f32 %v357, %v422
    %v440 = vmax.f32 %v360, %v425
    %v441 = vmax.f32 %v363, %v428
    %v442 = vmax.f32 %v366, %v431
    %v443 = vmax.f32 %v369, %v434
    %v445 = vperm.slane %v84, 0
    %v447 = vadd.f32 %v436, %v445
    %v448 = vadd.f32 %v437, %v445
    %v449 = vadd.f32 %v438, %v445
    %v450 = vadd.f32 %v439, %v445
    %v451 = vadd.f32 %v440, %v445
    %v452 = vadd.f32 %v441, %v445
    %v453 = vadd.f32 %v442, %v445
    %v454 = vadd.f32 %v443, %v445
    %v455 = vmax.f32 %v447, 0.0
    %v456 = vmax.f32 %v448, 0.0
    %v457 = vmax.f32 %v449, 0.0
    %v458 = vmax.f32 %v450, 0.0
    %v459 = vmax.f32 %v451, 0.0
    %v460 = vmax.f32 %v452, 0.0
    %v461 = vmax.f32 %v453, 0.0
    %v462 = vmax.f32 %v454, 0.0
    %vm463 = vcmask 130048
    %464 = vst.msk [vmem:[#allocation3 + $0x9] sm:$0xff] %vm463, %v455
    %465 = vst.msk [vmem:[#allocation3 + $0x11] sm:$0xff] %vm463, %v456
    %466 = vst.msk [vmem:[#allocation3 + $0x19] sm:$0xff] %vm463, %v457
    %467 = vst.msk [vmem:[#allocation3 + $0x21] sm:$0xff] %vm463, %v458
    %468 = vst.msk [vmem:[#allocation3 + $0x29] sm:$0xff] %vm463, %v459
    %469 = vst.msk [vmem:[#allocation3 + $0x31] sm:$0xff] %vm463, %v460
    %470 = vst.msk [vmem:[#allocation3 + $0x39] sm:$0xff] %vm463, %v461
    %vm471 = vcmask 128000
    %472 = vst.msk [vmem:[#allocation3 + $0x41] sm:$0x3f] %vm471, %v462
    %481 = vrot.lane.b32.xlu0 %v455, 16
    %v482 = vpop.permute.xlu0 %481
    %483 = vrot.lane.b32.xlu0 %v456, 16
    %v484 = vpop.permute.xlu0 %483
    %485 = vrot.lane.b32.xlu0 %v457, 16
    %v486 = vpop.permute.xlu0 %485
    %487 = vrot.lane.b32.xlu0 %v458, 16
    %v488 = vpop.permute.xlu0 %487
    %489 = vrot.lane.b32.xlu0 %v459, 16
    %v490 = vpop.permute.xlu0 %489
    %491 = vrot.lane.b32.xlu0 %v460, 16
    %v492 = vpop.permute.xlu0 %491
    %493 = vrot.lane.b32.xlu0 %v461, 16
    %v494 = vpop.permute.xlu0 %493
    %495 = vrot.lane.b32.xlu0 %v462, 16
    %v496 = vpop.permute.xlu0 %495
    %vm505 = vcmask 261248
    %506 = vst.msk [vmem:[#allocation3 + $0x8] sm:$0xff] %vm505, %v482
    %507 = vst.msk [vmem:[#allocation3 + $0x10] sm:$0xff] %vm505, %v484
    %508 = vst.msk [vmem:[#allocation3 + $0x18] sm:$0xff] %vm505, %v486
    %509 = vst.msk [vmem:[#allocation3 + $0x20] sm:$0xff] %vm505, %v488
    %510 = vst.msk [vmem:[#allocation3 + $0x28] sm:$0xff] %vm505, %v490
    %511 = vst.msk [vmem:[#allocation3 + $0x30] sm:$0xff] %vm505, %v492
    %512 = vst.msk [vmem:[#allocation3 + $0x38] sm:$0xff] %vm505, %v494
    %vm513 = vcmask 259200
    %514 = vst.msk [vmem:[#allocation3 + $0x40] sm:$0x3f] %vm513, %v496
    %515 = vrot.lane.b32.xlu0 %v455, 32
    %v516 = vpop.permute.xlu0 %515
    %517 = vrot.lane.b32.xlu0 %v456, 32
    %v518 = vpop.permute.xlu0 %517
    %519 = vrot.lane.b32.xlu0 %v457, 32
    %v520 = vpop.permute.xlu0 %519
    %521 = vrot.lane.b32.xlu0 %v458, 32
    %v522 = vpop.permute.xlu0 %521
    %523 = vrot.lane.b32.xlu0 %v459, 32
    %v524 = vpop.permute.xlu0 %523
    %525 = vrot.lane.b32.xlu0 %v460, 32
    %v526 = vpop.permute.xlu0 %525
    %527 = vrot.lane.b32.xlu0 %v461, 32
    %v528 = vpop.permute.xlu0 %527
    %529 = vrot.lane.b32.xlu0 %v462, 32
    %v530 = vpop.permute.xlu0 %529
    %vm539 = vcmask 392448
    %540 = vst.msk [vmem:[#allocation3 + $0x7] sm:$0xff] %vm539, %v516
    %541 = vst.msk [vmem:[#allocation3 + $0xf] sm:$0xff] %vm539, %v518
    %542 = vst.msk [vmem:[#allocation3 + $0x17] sm:$0xff] %vm539, %v520
    %543 = vst.msk [vmem:[#allocation3 + $0x1f] sm:$0xff] %vm539, %v522
    %544 = vst.msk [vmem:[#allocation3 + $0x27] sm:$0xff] %vm539, %v524
    %545 = vst.msk [vmem:[#allocation3 + $0x2f] sm:$0xff] %vm539, %v526
    %546 = vst.msk [vmem:[#allocation3 + $0x37] sm:$0xff] %vm539, %v528
    %vm547 = vcmask 390400
    %548 = vst.msk [vmem:[#allocation3 + $0x3f] sm:$0x3f] %vm547, %v530
    %s549 = scalar_lea.vmem [#allocation3], 8
    %v550 = vld [vmem:[%s549] ss:$2 sm:$0xff]
    %s551 = scalar_lea.vmem [#allocation3], 24
    %v552 = vld [vmem:[%s551] ss:$2 sm:$0xff]
    %s553 = scalar_lea.vmem [#allocation3], 40
    %v554 = vld [vmem:[%s553] ss:$2 sm:$0xff]
    %s555 = scalar_lea.vmem [#allocation3], 56
    %v556 = vld [vmem:[%s555] ss:$2 sm:$0x7f]
    %s557 = scalar_lea.vmem [#allocation3], 9
    %v558 = vld [vmem:[%s557] ss:$2 sm:$0xff]
    %s559 = scalar_lea.vmem [#allocation3], 25
    %v560 = vld [vmem:[%s559] ss:$2 sm:$0xff]
    %s561 = scalar_lea.vmem [#allocation3], 41
    %v562 = vld [vmem:[%s561] ss:$2 sm:$0xff]
    %s563 = scalar_lea.vmem [#allocation3], 57
    %v564 = vld [vmem:[%s563] ss:$2 sm:$0x7f]
    %v566 = vsel %vm69, %v550, 0
    %v569 = vsel %vm69, %v552, 0
    %v572 = vsel %vm69, %v554, 0
    %v575 = vsel %vm69, %v556, 0
    %577 = vmatpush.msra.mxu0 0.0
    %578 = vmatpush.msra.mxu0 0.0
    %579 = vmatpush.msra.mxu0 0.0
    %580 = vmatpush.msra.mxu0 0.0
    %581 = vmatpush.msra.mxu0 0.0
    %582 = vmatpush.msra.mxu0 0.0
    %583 = vmatpush.msra.mxu0 0.0
    %584 = vmatpush.msra.mxu0 0.0
    %585 = vmatpush.msra.mxu0 0.0
    %586 = vmatpush.msra.mxu0 0.0
    %587 = vmatpush.msra.mxu0 %v90
    %588 = vmatpush.msra.mxu0 %v89
    %589 = vmatpush.msra.mxu0 %v88
    %590 = vmatpush.msra.mxu0 %v87
    %591 = vmatpush.msra.mxu0 %v86
    %592 = vmatpush.msra.mxu0 %v85
    %593 = vmatmul.f32.gmra.mxu0 %v566
    %v594 = vpop.f32.mrf.mxu0
    %v595 = vadd.f32 0.0, %v594
    %596 = vmatmul.f32.gmra.mxu0 %v569
    %v597 = vpop.f32.mrf.mxu0
    %v598 = vadd.f32 0.0, %v597
    %599 = vmatmul.f32.gmra.mxu0 %v572
    %v600 = vpop.f32.mrf.mxu0
    %v601 = vadd.f32 0.0, %v600
    %602 = vmatmul.f32.gmra.mxu0 %v575
    %v603 = vpop.f32.mrf.mxu0
    %v604 = vadd.f32 0.0, %v603
    %605 = vdwg.mxu0
    %v607 = vsel %vm69, %v558, 0
    %v610 = vsel %vm69, %v560, 0
    %v613 = vsel %vm69, %v562, 0
    %v616 = vsel %vm69, %v564, 0
    %618 = vmatpush.msra.mxu0 0.0
    %619 = vmatpush.msra.mxu0 0.0
    %620 = vmatpush.msra.mxu0 0.0
    %621 = vmatpush.msra.mxu0 0.0
    %622 = vmatpush.msra.mxu0 0.0
    %623 = vmatpush.msra.mxu0 0.0
    %624 = vmatpush.msra.mxu0 0.0
    %625 = vmatpush.msra.mxu0 0.0
    %626 = vmatpush.msra.mxu0 0.0
    %627 = vmatpush.msra.mxu0 0.0
    %628 = vmatpush.msra.mxu0 %v90
    %629 = vmatpush.msra.mxu0 %v89
    %630 = vmatpush.msra.mxu0 %v88
    %631 = vmatpush.msra.mxu0 %v87
    %632 = vmatpush.msra.mxu0 %v86
    %633 = vmatpush.msra.mxu0 %v85
    %634 = vmatmul.f32.gmra.mxu0 %v607
    %v635 = vpop.f32.mrf.mxu0
    %v636 = vadd.f32 0.0, %v635
    %637 = vmatmul.f32.gmra.mxu0 %v610
    %v638 = vpop.f32.mrf.mxu0
    %v639 = vadd.f32 0.0, %v638
    %640 = vmatmul.f32.gmra.mxu0 %v613
    %v641 = vpop.f32.mrf.mxu0
    %v642 = vadd.f32 0.0, %v641
    %643 = vmatmul.f32.gmra.mxu0 %v616
    %v644 = vpop.f32.mrf.mxu0
    %v645 = vadd.f32 0.0, %v644
    %646 = vdwg.mxu0
    %v647 = vmax.f32 %v595, %v636
    %v648 = vmax.f32 %v598, %v639
    %v649 = vmax.f32 %v601, %v642
    %v650 = vmax.f32 %v604, %v645
    %v652 = vperm.slane %v91, 0
    %v654 = vadd.f32 %v647, %v652
    %v655 = vadd.f32 %v648, %v652
    %v656 = vadd.f32 %v649, %v652
    %v657 = vadd.f32 %v650, %v652
    %v658 = vmax.f32 %v654, 0.0
    %v659 = vmax.f32 %v655, 0.0
    %v660 = vmax.f32 %v656, 0.0
    %v661 = vmax.f32 %v657, 0.0
    %vm662 = vcmask 253952
    %663 = vst.msk [vmem:[#allocation4] sm:$0x1] %vm662, %v658
    %v665 = vrot.slane %v658, 7
    %v666 = vrot.slane %v665, 2
    %667 = vrot.lane.b32.xlu0 %v666, 32
    %v668 = vpop.permute.xlu0 %667
    %vm670 = vcmask 516352
    %671 = vst.msk [vmem:[#allocation4] sm:$0x1] %vm670, %v668
    %672 = vst.sshfl [vmem:[#allocation1] sm:$0xff pattern:$0x73625140] %v658
    %s673 = scalar_lea.vmem [#allocation1], 1
    %v674 = vld [vmem:[%s673] ss:$4 sm:$0xff]
    %675 = vrot.lane.b32.xlu0 %v674, 64
    %v676 = vpop.permute.xlu0 %675
    %vm678 = vcmask 778752
    %679 = vst.msk [vmem:[#allocation4] sm:$0x1] %vm678, %v676
    %680 = vst.sshfl [vmem:[#allocation1] sm:$0xff pattern:$0x73625140] %v658
    %s681 = scalar_lea.vmem [#allocation1], 1
    %v682 = vld [vmem:[%s681] ss:$4 sm:$0xff]
    %v683 = vrot.slane %v682, 7
    %v684 = vrot.slane %v683, 2
    %685 = vrot.lane.b32.xlu0 %v684, 96
    %v686 = vpop.permute.xlu0 %685
    %vm688 = vcmask 1041152
    %689 = vst.msk [vmem:[#allocation4] sm:$0x1] %vm688, %v686
    %690 = vst.sshfl [vmem:[#allocation1] sm:$0xff pattern:$0x73625140] %v658
    %s691 = scalar_lea.vmem [#allocation1], 2
    %v692 = vld [vmem:[%s691] ss:$4 sm:$0xff]
    %694 = vst.msk [vmem:[#allocation4 + $0x2] sm:$0x1] %vm662, %v692
    %695 = vst.sshfl [vmem:[#allocation1] sm:$0xff pattern:$0x73625140] %v658
    %s696 = scalar_lea.vmem [#allocation1], 2
    %v697 = vld [vmem:[%s696] ss:$4 sm:$0xff]
    %v698 = vrot.slane %v697, 7
    %v699 = vrot.slane %v698, 2
    %700 = vrot.lane.b32.xlu0 %v699, 32
    %v701 = vpop.permute.xlu0 %700
    %703 = vst.msk [vmem:[#allocation4 + $0x2] sm:$0x1] %vm670, %v701
    %704 = vst.sshfl [vmem:[#allocation1] sm:$0xff pattern:$0x73625140] %v658
    %s705 = scalar_lea.vmem [#allocation1], 3
    %v706 = vld [vmem:[%s705] ss:$4 sm:$0xff]
    %707 = vrot.lane.b32.xlu0 %v706, 64
    %v708 = vpop.permute.xlu0 %707
    %710 = vst.msk [vmem:[#allocation4 + $0x2] sm:$0x1] %vm678, %v708
    %711 = vst.sshfl [vmem:[#allocation1] sm:$0xff pattern:$0x73625140] %v658
    %s712 = scalar_lea.vmem [#allocation1], 3
    %v713 = vld [vmem:[%s712] ss:$4 sm:$0xff]
    %v714 = vrot.slane %v713, 7
    %v715 = vrot.slane %v714, 2
    %716 = vrot.lane.b32.xlu0 %v715, 96
    %v717 = vpop.permute.xlu0 %716
    %719 = vst.msk [vmem:[#allocation4 + $0x2] sm:$0x1] %vm688, %v717
    %720 = vst.msk [vmem:[#allocation4 + $0x4] sm:$0x1] %vm662, %v659
    %v722 = vrot.slane %v659, 7
    %v723 = vrot.slane %v722, 2
    %724 = vrot.lane.b32.xlu0 %v723, 32
    %v725 = vpop.permute.xlu0 %724
    %727 = vst.msk [vmem:[#allocation4 + $0x4] sm:$0x1] %vm670, %v725
    %728 = vst.sshfl [vmem:[#allocation1] sm:$0xff pattern:$0x73625140] %v659
    %s729 = scalar_lea.vmem [#allocation1], 1
    %v730 = vld [vmem:[%s729] ss:$4 sm:$0xff]
    %731 = vrot.lane.b32.xlu0 %v730, 64
    %v732 = vpop.permute.xlu0 %731
    %734 = vst.msk [vmem:[#allocation4 + $0x4] sm:$0x1] %vm678, %v732
    %735 = vst.sshfl [vmem:[#allocation1] sm:$0xff pattern:$0x73625140] %v659
    %s736 = scalar_lea.vmem [#allocation1], 1
    %v737 = vld [vmem:[%s736] ss:$4 sm:$0xff]
    %v738 = vrot.slane %v737, 7
    %v739 = vrot.slane %v738, 2
    %740 = vrot.lane.b32.xlu0 %v739, 96
    %v741 = vpop.permute.xlu0 %740
    %743 = vst.msk [vmem:[#allocation4 + $0x4] sm:$0x1] %vm688, %v741
    %744 = vst.sshfl [vmem:[#allocation1] sm:$0xff pattern:$0x73625140] %v659
    %s745 = scalar_lea.vmem [#allocation1], 2
    %v746 = vld [vmem:[%s745] ss:$4 sm:$0xff]
    %748 = vst.msk [vmem:[#allocation4 + $0x6] sm:$0x1] %vm662, %v746
    %749 = vst.sshfl [vmem:[#allocation1] sm:$0xff pattern:$0x73625140] %v659
    %s750 = scalar_lea.vmem [#allocation1], 2
    %v751 = vld [vmem:[%s750] ss:$4 sm:$0xff]
    %v752 = vrot.slane %v751, 7
    %v753 = vrot.slane %v752, 2
    %754 = vrot.lane.b32.xlu0 %v753, 32
    %v755 = vpop.permute.xlu0 %754
    %757 = vst.msk [vmem:[#allocation4 + $0x6] sm:$0x1] %vm670, %v755
    %758 = vst.sshfl [vmem:[#allocation1] sm:$0xff pattern:$0x73625140] %v659
    %s759 = scalar_lea.vmem [#allocation1], 3
    %v760 = vld [vmem:[%s759] ss:$4 sm:$0xff]
    %761 = vrot.lane.b32.xlu0 %v760, 64
    %v762 = vpop.permute.xlu0 %761
    %764 = vst.msk [vmem:[#allocation4 + $0x6] sm:$0x1] %vm678, %v762
    %765 = vst.sshfl [vmem:[#allocation1] sm:$0xff pattern:$0x73625140] %v659
    %s766 = scalar_lea.vmem [#allocation1], 3
    %v767 = vld [vmem:[%s766] ss:$4 sm:$0xff]
    %v768 = vrot.slane %v767, 7
    %v769 = vrot.slane %v768, 2
    %770 = vrot.lane.b32.xlu0 %v769, 96
    %v771 = vpop.permute.xlu0 %770
    %773 = vst.msk [vmem:[#allocation4 + $0x6] sm:$0x1] %vm688, %v771
    %774 = vst.msk [vmem:[#allocation4 + $0x8] sm:$0x1] %vm662, %v660
    %v776 = vrot.slane %v660, 7
    %v777 = vrot.slane %v776, 2
    %778 = vrot.lane.b32.xlu0 %v777, 32
    %v779 = vpop.permute.xlu0 %778
    %781 = vst.msk [vmem:[#allocation4 + $0x8] sm:$0x1] %vm670, %v779
    %782 = vst.sshfl [vmem:[#allocation1] sm:$0xff pattern:$0x73625140] %v660
    %s783 = scalar_lea.vmem [#allocation1], 1
    %v784 = vld [vmem:[%s783] ss:$4 sm:$0xff]
    %785 = vrot.lane.b32.xlu0 %v784, 64
    %v786 = vpop.permute.xlu0 %785
    %788 = vst.msk [vmem:[#allocation4 + $0x8] sm:$0x1] %vm678, %v786
    %789 = vst.sshfl [vmem:[#allocation1] sm:$0xff pattern:$0x73625140] %v660
    %s790 = scalar_lea.vmem [#allocation1], 1
    %v791 = vld [vmem:[%s790] ss:$4 sm:$0xff]
    %v792 = vrot.slane %v791, 7
    %v793 = vrot.slane %v792, 2
    %794 = vrot.lane.b32.xlu0 %v793, 96
    %v795 = vpop.permute.xlu0 %794
    %797 = vst.msk [vmem:[#allocation4 + $0x8] sm:$0x1] %vm688, %v795
    %798 = vst.sshfl [vmem:[#allocation1] sm:$0xff pattern:$0x73625140] %v660
    %s799 = scalar_lea.vmem [#allocation1], 2
    %v800 = vld [vmem:[%s799] ss:$4 sm:$0xff]
    %802 = vst.msk [vmem:[#allocation4 + $0xa] sm:$0x1] %vm662, %v800
    %803 = vst.sshfl [vmem:[#allocation1] sm:$0xff pattern:$0x73625140] %v660
    %s804 = scalar_lea.vmem [#allocation1], 2
    %v805 = vld [vmem:[%s804] ss:$4 sm:$0xff]
    %v806 = vrot.slane %v805, 7
    %v807 = vrot.slane %v806, 2
    %808 = vrot.lane.b32.xlu0 %v807, 32
    %v809 = vpop.permute.xlu0 %808
    %811 = vst.msk [vmem:[#allocation4 + $0xa] sm:$0x1] %vm670, %v809
    %812 = vst.sshfl [vmem:[#allocation1] sm:$0xff pattern:$0x73625140] %v660
    %s813 = scalar_lea.vmem [#allocation1], 3
    %v814 = vld [vmem:[%s813] ss:$4 sm:$0xff]
    %815 = vrot.lane.b32.xlu0 %v814, 64
    %v816 = vpop.permute.xlu0 %815
    %818 = vst.msk [vmem:[#allocation4 + $0xa] sm:$0x1] %vm678, %v816
    %819 = vst.sshfl [vmem:[#allocation1] sm:$0xff pattern:$0x73625140] %v660
    %s820 = scalar_lea.vmem [#allocation1], 3
    %v821 = vld [vmem:[%s820] ss:$4 sm:$0xff]
    %v822 = vrot.slane %v821, 7
    %v823 = vrot.slane %v822, 2
    %824 = vrot.lane.b32.xlu0 %v823, 96
    %v825 = vpop.permute.xlu0 %824
    %827 = vst.msk [vmem:[#allocation4 + $0xa] sm:$0x1] %vm688, %v825
    %828 = vst.msk [vmem:[#allocation4 + $0xc] sm:$0x1] %vm662, %v661
    %v830 = vrot.slane %v661, 7
    %v831 = vrot.slane %v830, 2
    %832 = vrot.lane.b32.xlu0 %v831, 32
    %v833 = vpop.permute.xlu0 %832
    %835 = vst.msk [vmem:[#allocation4 + $0xc] sm:$0x1] %vm670, %v833
    %836 = vst.sshfl [vmem:[#allocation1] sm:$0xff pattern:$0x73625140] %v661
    %s837 = scalar_lea.vmem [#allocation1], 1
    %v838 = vld [vmem:[%s837] ss:$4 sm:$0xff]
    %839 = vrot.lane.b32.xlu0 %v838, 64
    %v840 = vpop.permute.xlu0 %839
    %842 = vst.msk [vmem:[#allocation4 + $0xc] sm:$0x1] %vm678, %v840
    %843 = vst.sshfl [vmem:[#allocation1] sm:$0xff pattern:$0x73625140] %v661
    %s844 = scalar_lea.vmem [#allocation1], 1
    %v845 = vld [vmem:[%s844] ss:$4 sm:$0xff]
    %v846 = vrot.slane %v845, 7
    %v847 = vrot.slane %v846, 2
    %848 = vrot.lane.b32.xlu0 %v847, 96
    %v849 = vpop.permute.xlu0 %848
    %851 = vst.msk [vmem:[#allocation4 + $0xc] sm:$0x1] %vm688, %v849
    %852 = vst.sshfl [vmem:[#allocation1] sm:$0xff pattern:$0x73625140] %v661
    %s853 = scalar_lea.vmem [#allocation1], 2
    %v854 = vld [vmem:[%s853] ss:$4 sm:$0xff]
    %856 = vst.msk [vmem:[#allocation4 + $0xe] sm:$0x1] %vm662, %v854
    %857 = vst.sshfl [vmem:[#allocation1] sm:$0xff pattern:$0x73625140] %v661
    %s858 = scalar_lea.vmem [#allocation1], 2
    %v859 = vld [vmem:[%s858] ss:$4 sm:$0xff]
    %v860 = vrot.slane %v859, 7
    %v861 = vrot.slane %v860, 2
    %862 = vrot.lane.b32.xlu0 %v861, 32
    %v863 = vpop.permute.xlu0 %862
    %865 = vst.msk [vmem:[#allocation4 + $0xe] sm:$0x1] %vm670, %v863
    %866 = vst.sshfl [vmem:[#allocation1] sm:$0xff pattern:$0x73625140] %v661
    %s867 = scalar_lea.vmem [#allocation1], 3
    %v868 = vld [vmem:[%s867] ss:$4 sm:$0xff]
    %869 = vrot.lane.b32.xlu0 %v868, 64
    %v870 = vpop.permute.xlu0 %869
    %872 = vst.msk [vmem:[#allocation4 + $0xe] sm:$0x1] %vm678, %v870
    %s873 = scalar_lea.vmem %s0, 128
    %v874 = vld [vmem:[%s873] sm:$0xff]
    %v875 = vld [vmem:[%s873 + $0x8] sm:$0xff]
    %v876 = vld [vmem:[%s873 + $0x10] sm:$0xff]
    %v877 = vld [vmem:[%s873 + $0x18] sm:$0xff]
    %v878 = vld [vmem:[%s873 + $0x20] sm:$0xff]
    %v879 = vld [vmem:[%s873 + $0x28] sm:$0xff]
    %v880 = vld [vmem:[%s873 + $0x30] sm:$0xff]
    %v881 = vld [vmem:[%s873 + $0x38] sm:$0xff]
    %v882 = vld [vmem:[%s873 + $0x40] sm:$0xff]
    %v883 = vld [vmem:[%s873 + $0x48] sm:$0xff]
    %v884 = vld [vmem:[%s873 + $0x50] sm:$0xff]
    %v885 = vld [vmem:[%s873 + $0x58] sm:$0xff]
    %v886 = vld [vmem:[%s873 + $0x60] sm:$0xff]
    %v887 = vld [vmem:[%s873 + $0x68] sm:$0xff]
    %v888 = vld [vmem:[%s873 + $0x70] sm:$0xff]
    %v889 = vld [vmem:[%s873 + $0x78] sm:$0xf]
    %890 = vst.msk [vmem:[#allocation2 + $0x9] sm:$0xff] %vm108, %v874
    %891 = vst.msk [vmem:[#allocation2 + $0x11] sm:$0xff] %vm108, %v875
    %892 = vst.msk [vmem:[#allocation2 + $0x19] sm:$0xff] %vm108, %v876
    %893 = vst.msk [vmem:[#allocation2 + $0x21] sm:$0xff] %vm108, %v877
    %894 = vst.msk [vmem:[#allocation2 + $0x29] sm:$0xff] %vm108, %v878
    %895 = vst.msk [vmem:[#allocation2 + $0x31] sm:$0xff] %vm108, %v879
    %896 = vst.msk [vmem:[#allocation2 + $0x39] sm:$0xff] %vm108, %v880
    %897 = vst.msk [vmem:[#allocation2 + $0x41] sm:$0xff] %vm108, %v881
    %898 = vst.msk [vmem:[#allocation2 + $0x49] sm:$0xff] %vm108, %v882
    %899 = vst.msk [vmem:[#allocation2 + $0x51] sm:$0xff] %vm108, %v883
    %900 = vst.msk [vmem:[#allocation2 + $0x59] sm:$0xff] %vm108, %v884
    %901 = vst.msk [vmem:[#allocation2 + $0x61] sm:$0xff] %vm108, %v885
    %902 = vst.msk [vmem:[#allocation2 + $0x69] sm:$0xff] %vm108, %v886
    %903 = vst.msk [vmem:[#allocation2 + $0x71] sm:$0xff] %vm108, %v887
    %904 = vst.msk [vmem:[#allocation2 + $0x79] sm:$0xff] %vm108, %v888
    %905 = vst.msk [vmem:[#allocation2 + $0x81] sm:$0xf] %vm124, %v889
    %922 = vrot.lane.b32.xlu0 %v874, 8
    %v923 = vpop.permute.xlu0 %922
    %924 = vrot.lane.b32.xlu0 %v875, 8
    %v925 = vpop.permute.xlu0 %924
    %926 = vrot.lane.b32.xlu0 %v876, 8
    %v927 = vpop.permute.xlu0 %926
    %928 = vrot.lane.b32.xlu0 %v877, 8
    %v929 = vpop.permute.xlu0 %928
    %930 = vrot.lane.b32.xlu0 %v878, 8
    %v931 = vpop.permute.xlu0 %930
    %932 = vrot.lane.b32.xlu0 %v879, 8
    %v933 = vpop.permute.xlu0 %932
    %934 = vrot.lane.b32.xlu0 %v880, 8
    %v935 = vpop.permute.xlu0 %934
    %936 = vrot.lane.b32.xlu0 %v881, 8
    %v937 = vpop.permute.xlu0 %936
    %938 = vrot.lane.b32.xlu0 %v882, 8
    %v939 = vpop.permute.xlu0 %938
    %940 = vrot.lane.b32.xlu0 %v883, 8
    %v941 = vpop.permute.xlu0 %940
    %942 = vrot.lane.b32.xlu0 %v884, 8
    %v943 = vpop.permute.xlu0 %942
    %944 = vrot.lane.b32.xlu0 %v885, 8
    %v945 = vpop.permute.xlu0 %944
    %946 = vrot.lane.b32.xlu0 %v886, 8
    %v947 = vpop.permute.xlu0 %946
    %948 = vrot.lane.b32.xlu0 %v887, 8
    %v949 = vpop.permute.xlu0 %948
    %950 = vrot.lane.b32.xlu0 %v888, 8
    %v951 = vpop.permute.xlu0 %950
    %952 = vrot.lane.b32.xlu0 %v889, 8
    %v953 = vpop.permute.xlu0 %952
    %970 = vst.msk [vmem:[#allocation2 + $0x8] sm:$0xff] %vm190, %v923
    %971 = vst.msk [vmem:[#allocation2 + $0x10] sm:$0xff] %vm190, %v925
    %972 = vst.msk [vmem:[#allocation2 + $0x18] sm:$0xff] %vm190, %v927
    %973 = vst.msk [vmem:[#allocation2 + $0x20] sm:$0xff] %vm190, %v929
    %974 = vst.msk [vmem:[#allocation2 + $0x28] sm:$0xff] %vm190, %v931
    %975 = vst.msk [vmem:[#allocation2 + $0x30] sm:$0xff] %vm190, %v933
    %976 = vst.msk [vmem:[#allocation2 + $0x38] sm:$0xff] %vm190, %v935
    %977 = vst.msk [vmem:[#allocation2 + $0x40] sm:$0xff] %vm190, %v937
    %978 = vst.msk [vmem:[#allocation2 + $0x48] sm:$0xff] %vm190, %v939
    %979 = vst.msk [vmem:[#allocation2 + $0x50] sm:$0xff] %vm190, %v941
    %980 = vst.msk [vmem:[#allocation2 + $0x58] sm:$0xff] %vm190, %v943
    %981 = vst.msk [vmem:[#allocation2 + $0x60] sm:$0xff] %vm190, %v945
    %982 = vst.msk [vmem:[#allocation2 + $0x68] sm:$0xff] %vm190, %v947
    %983 = vst.msk [vmem:[#allocation2 + $0x70] sm:$0xff] %vm190, %v949
    %984 = vst.msk [vmem:[#allocation2 + $0x78] sm:$0xff] %vm190, %v951
    %985 = vst.msk [vmem:[#allocation2 + $0x80] sm:$0xf] %vm206, %v953
    %986 = vrot.lane.b32.xlu0 %v874, 16
    %v987 = vpop.permute.xlu0 %986
    %988 = vrot.lane.b32.xlu0 %v875, 16
    %v989 = vpop.permute.xlu0 %988
    %990 = vrot.lane.b32.xlu0 %v876, 16
    %v991 = vpop.permute.xlu0 %990
    %992 = vrot.lane.b32.xlu0 %v877, 16
    %v993 = vpop.permute.xlu0 %992
    %994 = vrot.lane.b32.xlu0 %v878, 16
    %v995 = vpop.permute.xlu0 %994
    %996 = vrot.lane.b32.xlu0 %v879, 16
    %v997 = vpop.permute.xlu0 %996
    %998 = vrot.lane.b32.xlu0 %v880, 16
    %v999 = vpop.permute.xlu0 %998
    %1000 = vrot.lane.b32.xlu0 %v881, 16
    %v1001 = vpop.permute.xlu0 %1000
    %1002 = vrot.lane.b32.xlu0 %v882, 16
    %v1003 = vpop.permute.xlu0 %1002
    %1004 = vrot.lane.b32.xlu0 %v883, 16
    %v1005 = vpop.permute.xlu0 %1004
    %1006 = vrot.lane.b32.xlu0 %v884, 16
    %v1007 = vpop.permute.xlu0 %1006
    %1008 = vrot.lane.b32.xlu0 %v885, 16
    %v1009 = vpop.permute.xlu0 %1008
    %1010 = vrot.lane.b32.xlu0 %v886, 16
    %v1011 = vpop.permute.xlu0 %1010
    %1012 = vrot.lane.b32.xlu0 %v887, 16
    %v1013 = vpop.permute.xlu0 %1012
    %1014 = vrot.lane.b32.xlu0 %v888, 16
    %v1015 = vpop.permute.xlu0 %1014
    %1016 = vrot.lane.b32.xlu0 %v889, 16
    %v1017 = vpop.permute.xlu0 %1016
    %1034 = vst.msk [vmem:[#allocation2 + $0x7] sm:$0xff] %vm256, %v987
    %1035 = vst.msk [vmem:[#allocation2 + $0xf] sm:$0xff] %vm256, %v989
    %1036 = vst.msk [vmem:[#allocation2 + $0x17] sm:$0xff] %vm256, %v991
    %1037 = vst.msk [vmem:[#allocation2 + $0x1f] sm:$0xff] %vm256, %v993
    %1038 = vst.msk [vmem:[#allocation2 + $0x27] sm:$0xff] %vm256, %v995
    %1039 = vst.msk [vmem:[#allocation2 + $0x2f] sm:$0xff] %vm256, %v997
    %1040 = vst.msk [vmem:[#allocation2 + $0x37] sm:$0xff] %vm256, %v999
    %1041 = vst.msk [vmem:[#allocation2 + $0x3f] sm:$0xff] %vm256, %v1001
    %1042 = vst.msk [vmem:[#allocation2 + $0x47] sm:$0xff] %vm256, %v1003
    %1043 = vst.msk [vmem:[#allocation2 + $0x4f] sm:$0xff] %vm256, %v1005
    %1044 = vst.msk [vmem:[#allocation2 + $0x57] sm:$0xff] %vm256, %v1007
    %1045 = vst.msk [vmem:[#allocation2 + $0x5f] sm:$0xff] %vm256, %v1009
    %1046 = vst.msk [vmem:[#allocation2 + $0x67] sm:$0xff] %vm256, %v1011
    %1047 = vst.msk [vmem:[#allocation2 + $0x6f] sm:$0xff] %vm256, %v1013
    %1048 = vst.msk [vmem:[#allocation2 + $0x77] sm:$0xff] %vm256, %v1015
    %1049 = vst.msk [vmem:[#allocation2 + $0x7f] sm:$0xf] %vm272, %v1017
    %v1050 = vld [vmem:[%s274] ss:$2 sm:$0xff]
    %v1051 = vld [vmem:[%s276] ss:$2 sm:$0xff]
    %v1052 = vld [vmem:[%s278] ss:$2 sm:$0xff]
    %v1053 = vld [vmem:[%s280] ss:$2 sm:$0xff]
    %v1054 = vld [vmem:[%s282] ss:$2 sm:$0xff]
    %v1055 = vld [vmem:[%s284] ss:$2 sm:$0xff]
    %v1056 = vld [vmem:[%s286] ss:$2 sm:$0xff]
    %v1057 = vld [vmem:[%s288] ss:$2 sm:$0x3f]
    %v1058 = vld [vmem:[%s290] ss:$2 sm:$0xff]
    %v1059 = vld [vmem:[%s292] ss:$2 sm:$0xff]
    %v1060 = vld [vmem:[%s294] ss:$2 sm:$0xff]
    %v1061 = vld [vmem:[%s296] ss:$2 sm:$0xff]
    %v1062 = vld [vmem:[%s298] ss:$2 sm:$0xff]
    %v1063 = vld [vmem:[%s300] ss:$2 sm:$0xff]
    %v1064 = vld [vmem:[%s302] ss:$2 sm:$0xff]
    %v1065 = vld [vmem:[%s304] ss:$2 sm:$0x3f]
    %v1067 = vsel %vm49, %v1050, 0
    %v1070 = vsel %vm49, %v1051, 0
    %v1073 = vsel %vm49, %v1052, 0
    %v1076 = vsel %vm49, %v1053, 0
    %v1079 = vsel %vm49, %v1054, 0
    %v1082 = vsel %vm49, %v1055, 0
    %v1085 = vsel %vm49, %v1056, 0
    %v1088 = vsel %vm49, %v1057, 0
    %1090 = vmatpush.msra.mxu0 0.0
    %1091 = vmatpush.msra.mxu0 0.0
    %1092 = vmatpush.msra.mxu0 0.0
    %1093 = vmatpush.msra.mxu0 0.0
    %1094 = vmatpush.msra.mxu0 0.0
    %1095 = vmatpush.msra.mxu0 0.0
    %1096 = vmatpush.msra.mxu0 0.0
    %1097 = vmatpush.msra.mxu0 0.0
    %1098 = vmatpush.msra.mxu0 0.0
    %1099 = vmatpush.msra.mxu0 0.0
    %1100 = vmatpush.msra.mxu0 0.0
    %1101 = vmatpush.msra.mxu0 0.0
    %1102 = vmatpush.msra.mxu0 0.0
    %1103 = vmatpush.msra.mxu0 %v83
    %1104 = vmatpush.msra.mxu0 %v82
    %1105 = vmatpush.msra.mxu0 %v81
    %1106 = vmatmul.f32.gmra.mxu0 %v1067
    %v1107 = vpop.f32.mrf.mxu0
    %v1108 = vadd.f32 0.0, %v1107
    %1109 = vmatmul.f32.gmra.mxu0 %v1070
    %v1110 = vpop.f32.mrf.mxu0
    %v1111 = vadd.f32 0.0, %v1110
    %1112 = vmatmul.f32.gmra.mxu0 %v1073
    %v1113 = vpop.f32.mrf.mxu0
    %v1114 = vadd.f32 0.0, %v1113
    %1115 = vmatmul.f32.gmra.mxu0 %v1076
    %v1116 = vpop.f32.mrf.mxu0
    %v1117 = vadd.f32 0.0, %v1116
    %1118 = vmatmul.f32.gmra.mxu0 %v1079
    %v1119 = vpop.f32.mrf.mxu0
    %v1120 = vadd.f32 0.0, %v1119
    %1121 = vmatmul.f32.gmra.mxu0 %v1082
    %v1122 = vpop.f32.mrf.mxu0
    %v1123 = vadd.f32 0.0, %v1122
    %1124 = vmatmul.f32.gmra.mxu0 %v1085
    %v1125 = vpop.f32.mrf.mxu0
    %v1126 = vadd.f32 0.0, %v1125
    %1127 = vmatmul.f32.gmra.mxu0 %v1088
    %v1128 = vpop.f32.mrf.mxu0
    %v1129 = vadd.f32 0.0, %v1128
    %1130 = vdwg.mxu0
    %v1132 = vsel %vm49, %v1058, 0
    %v1135 = vsel %vm49, %v1059, 0
    %v1138 = vsel %vm49, %v1060, 0
    %v1141 = vsel %vm49, %v1061, 0
    %v1144 = vsel %vm49, %v1062, 0
    %v1147 = vsel %vm49, %v1063, 0
    %v1150 = vsel %vm49, %v1064, 0
    %v1153 = vsel %vm49, %v1065, 0
    %1155 = vmatpush.msra.mxu0 0.0
    %1156 = vmatpush.msra.mxu0 0.0
    %1157 = vmatpush.msra.mxu0 0.0
    %1158 = vmatpush.msra.mxu0 0.0
    %1159 = vmatpush.msra.mxu0 0.0
    %1160 = vmatpush.msra.mxu0 0.0
    %1161 = vmatpush.msra.mxu0 0.0
    %1162 = vmatpush.msra.mxu0 0.0
    %1163 = vmatpush.msra.mxu0 0.0
    %1164 = vmatpush.msra.mxu0 0.0
    %1165 = vmatpush.msra.mxu0 0.0
    %1166 = vmatpush.msra.mxu0 0.0
    %1167 = vmatpush.msra.mxu0 0.0
    %1168 = vmatpush.msra.mxu0 %v83
    %1169 = vmatpush.msra.mxu0 %v82
    %1170 = vmatpush.msra.mxu0 %v81
    %1171 = vmatmul.f32.gmra.mxu0 %v1132
    %v1172 = vpop.f32.mrf.mxu0
    %v1173 = vadd.f32 0.0, %v1172
    %1174 = vmatmul.f32.gmra.mxu0 %v1135
    %v1175 = vpop.f32.mrf.mxu0
    %v1176 = vadd.f32 0.0, %v1175
    %1177 = vmatmul.f32.gmra.mxu0 %v1138
    %v1178 = vpop.f32.mrf.mxu0
    %v1179 = vadd.f32 0.0, %v1178
    %1180 = vmatmul.f32.gmra.mxu0 %v1141
    %v1181 = vpop.f32.mrf.mxu0
    %v1182 = vadd.f32 0.0, %v1181
    %1183 = vmatmul.f32.gmra.mxu0 %v1144
    %v1184 = vpop.f32.mrf.mxu0
    %v1185 = vadd.f32 0.0, %v1184
    %1186 = vmatmul.f32.gmra.mxu0 %v1147
    %v1187 = vpop.f32.mrf.mxu0
    %v1188 = vadd.f32 0.0, %v1187
    %1189 = vmatmul.f32.gmra.mxu0 %v1150
    %v1190 = vpop.f32.mrf.mxu0
    %v1191 = vadd.f32 0.0, %v1190
    %1192 = vmatmul.f32.gmra.mxu0 %v1153
    %v1193 = vpop.f32.mrf.mxu0
    %v1194 = vadd.f32 0.0, %v1193
    %1195 = vdwg.mxu0
    %v1196 = vmax.f32 %v1108, %v1173
    %v1197 = vmax.f32 %v1111, %v1176
    %v1198 = vmax.f32 %v1114, %v1179
    %v1199 = vmax.f32 %v1117, %v1182
    %v1200 = vmax.f32 %v1120, %v1185
    %v1201 = vmax.f32 %v1123, %v1188
    %v1202 = vmax.f32 %v1126, %v1191
    %v1203 = vmax.f32 %v1129, %v1194
    %v1204 = vadd.f32 %v1196, %v445
    %v1205 = vadd.f32 %v1197, %v445
    %v1206 = vadd.f32 %v1198, %v445
    %v1207 = vadd.f32 %v1199, %v445
    %v1208 = vadd.f32 %v1200, %v445
    %v1209 = vadd.f32 %v1201, %v445
    %v1210 = vadd.f32 %v1202, %v445
    %v1211 = vadd.f32 %v1203, %v445
    %v1212 = vmax.f32 %v1204, 0.0
    %v1213 = vmax.f32 %v1205, 0.0
    %v1214 = vmax.f32 %v1206, 0.0
    %v1215 = vmax.f32 %v1207, 0.0
    %v1216 = vmax.f32 %v1208, 0.0
    %v1217 = vmax.f32 %v1209, 0.0
    %v1218 = vmax.f32 %v1210, 0.0
    %v1219 = vmax.f32 %v1211, 0.0
    %1220 = vst.msk [vmem:[#allocation3 + $0x9] sm:$0xff] %vm463, %v1212
    %1221 = vst.msk [vmem:[#allocation3 + $0x11] sm:$0xff] %vm463, %v1213
    %1222 = vst.msk [vmem:[#allocation3 + $0x19] sm:$0xff] %vm463, %v1214
    %1223 = vst.msk [vmem:[#allocation3 + $0x21] sm:$0xff] %vm463, %v1215
    %1224 = vst.msk [vmem:[#allocation3 + $0x29] sm:$0xff] %vm463, %v1216
    %1225 = vst.msk [vmem:[#allocation3 + $0x31] sm:$0xff] %vm463, %v1217
    %1226 = vst.msk [vmem:[#allocation3 + $0x39] sm:$0xff] %vm463, %v1218
    %1227 = vst.msk [vmem:[#allocation3 + $0x41] sm:$0x3f] %vm471, %v1219
    %1236 = vrot.lane.b32.xlu0 %v1212, 16
    %v1237 = vpop.permute.xlu0 %1236
    %1238 = vrot.lane.b32.xlu0 %v1213, 16
    %v1239 = vpop.permute.xlu0 %1238
    %1240 = vrot.lane.b32.xlu0 %v1214, 16
    %v1241 = vpop.permute.xlu0 %1240
    %1242 = vrot.lane.b32.xlu0 %v1215, 16
    %v1243 = vpop.permute.xlu0 %1242
    %1244 = vrot.lane.b32.xlu0 %v1216, 16
    %v1245 = vpop.permute.xlu0 %1244
    %1246 = vrot.lane.b32.xlu0 %v1217, 16
    %v1247 = vpop.permute.xlu0 %1246
    %1248 = vrot.lane.b32.xlu0 %v1218, 16
    %v1249 = vpop.permute.xlu0 %1248
    %1250 = vrot.lane.b32.xlu0 %v1219, 16
    %v1251 = vpop.permute.xlu0 %1250
    %1260 = vst.msk [vmem:[#allocation3 + $0x8] sm:$0xff] %vm505, %v1237
    %1261 = vst.msk [vmem:[#allocation3 + $0x10] sm:$0xff] %vm505, %v1239
    %1262 = vst.msk [vmem:[#allocation3 + $0x18] sm:$0xff] %vm505, %v1241
    %1263 = vst.msk [vmem:[#allocation3 + $0x20] sm:$0xff] %vm505, %v1243
    %1264 = vst.msk [vmem:[#allocation3 + $0x28] sm:$0xff] %vm505, %v1245
    %1265 = vst.msk [vmem:[#allocation3 + $0x30] sm:$0xff] %vm505, %v1247
    %1266 = vst.msk [vmem:[#allocation3 + $0x38] sm:$0xff] %vm505, %v1249
    %1267 = vst.msk [vmem:[#allocation3 + $0x40] sm:$0x3f] %vm513, %v1251
    %1268 = vrot.lane.b32.xlu0 %v1212, 32
    %v1269 = vpop.permute.xlu0 %1268
    %1270 = vrot.lane.b32.xlu0 %v1213, 32
    %v1271 = vpop.permute.xlu0 %1270
    %1272 = vrot.lane.b32.xlu0 %v1214, 32
    %v1273 = vpop.permute.xlu0 %1272
    %1274 = vrot.lane.b32.xlu0 %v1215, 32
    %v1275 = vpop.permute.xlu0 %1274
    %1276 = vrot.lane.b32.xlu0 %v1216, 32
    %v1277 = vpop.permute.xlu0 %1276
    %1278 = vrot.lane.b32.xlu0 %v1217, 32
    %v1279 = vpop.permute.xlu0 %1278
    %1280 = vrot.lane.b32.xlu0 %v1218, 32
    %v1281 = vpop.permute.xlu0 %1280
    %1282 = vrot.lane.b32.xlu0 %v1219, 32
    %v1283 = vpop.permute.xlu0 %1282
    %1292 = vst.msk [vmem:[#allocation3 + $0x7] sm:$0xff] %vm539, %v1269
    %1293 = vst.msk [vmem:[#allocation3 + $0xf] sm:$0xff] %vm539, %v1271
    %1294 = vst.msk [vmem:[#allocation3 + $0x17] sm:$0xff] %vm539, %v1273
    %1295 = vst.msk [vmem:[#allocation3 + $0x1f] sm:$0xff] %vm539, %v1275
    %1296 = vst.msk [vmem:[#allocation3 + $0x27] sm:$0xff] %vm539, %v1277
    %1297 = vst.msk [vmem:[#allocation3 + $0x2f] sm:$0xff] %vm539, %v1279
    %1298 = vst.msk [vmem:[#allocation3 + $0x37] sm:$0xff] %vm539, %v1281
    %1299 = vst.msk [vmem:[#allocation3 + $0x3f] sm:$0x3f] %vm547, %v1283
    %v1300 = vld [vmem:[%s549] ss:$2 sm:$0xff]
    %v1301 = vld [vmem:[%s551] ss:$2 sm:$0xff]
    %v1302 = vld [vmem:[%s553] ss:$2 sm:$0xff]
    %v1303 = vld [vmem:[%s555] ss:$2 sm:$0x7f]
    %v1304 = vld [vmem:[%s557] ss:$2 sm:$0xff]
    %v1305 = vld [vmem:[%s559] ss:$2 sm:$0xff]
    %v1306 = vld [vmem:[%s561] ss:$2 sm:$0xff]
    %v1307 = vld [vmem:[%s563] ss:$2 sm:$0x7f]
    %v1309 = vsel %vm69, %v1300, 0
    %v1312 = vsel %vm69, %v1301, 0
    %v1315 = vsel %vm69, %v1302, 0
    %v1318 = vsel %vm69, %v1303, 0
    %1320 = vmatpush.msra.mxu0 0.0
    %1321 = vmatpush.msra.mxu0 0.0
    %1322 = vmatpush.msra.mxu0 0.0
    %1323 = vmatpush.msra.mxu0 0.0
    %1324 = vmatpush.msra.mxu0 0.0
    %1325 = vmatpush.msra.mxu0 0.0
    %1326 = vmatpush.msra.mxu0 0.0
    %1327 = vmatpush.msra.mxu0 0.0
    %1328 = vmatpush.msra.mxu0 0.0
    %1329 = vmatpush.msra.mxu0 0.0
    %1330 = vmatpush.msra.mxu0 %v90
    %1331 = vmatpush.msra.mxu0 %v89
    %1332 = vmatpush.msra.mxu0 %v88
    %1333 = vmatpush.msra.mxu0 %v87
    %1334 = vmatpush.msra.mxu0 %v86
    %1335 = vmatpush.msra.mxu0 %v85
    %1336 = vmatmul.f32.gmra.mxu0 %v1309
    %v1337 = vpop.f32.mrf.mxu0
    %v1338 = vadd.f32 0.0, %v1337
    %1339 = vmatmul.f32.gmra.mxu0 %v1312
    %v1340 = vpop.f32.mrf.mxu0
    %v1341 = vadd.f32 0.0, %v1340
    %1342 = vmatmul.f32.gmra.mxu0 %v1315
    %v1343 = vpop.f32.mrf.mxu0
    %v1344 = vadd.f32 0.0, %v1343
    %1345 = vmatmul.f32.gmra.mxu0 %v1318
    %v1346 = vpop.f32.mrf.mxu0
    %v1347 = vadd.f32 0.0, %v1346
    %1348 = vdwg.mxu0
    %v1350 = vsel %vm69, %v1304, 0
    %v1353 = vsel %vm69, %v1305, 0
    %v1356 = vsel %vm69, %v1306, 0
    %v1359 = vsel %vm69, %v1307, 0
    %1361 = vmatpush.msra.mxu0 0.0
    %1362 = vmatpush.msra.mxu0 0.0
    %1363 = vmatpush.msra.mxu0 0.0
    %1364 = vmatpush.msra.mxu0 0.0
    %1365 = vmatpush.msra.mxu0 0.0
    %1366 = vmatpush.msra.mxu0 0.0
    %1367 = vmatpush.msra.mxu0 0.0
    %1368 = vmatpush.msra.mxu0 0.0
    %1369 = vmatpush.msra.mxu0 0.0
    %1370 = vmatpush.msra.mxu0 0.0
    %1371 = vmatpush.msra.mxu0 %v90
    %1372 = vmatpush.msra.mxu0 %v89
    %1373 = vmatpush.msra.mxu0 %v88
    %1374 = vmatpush.msra.mxu0 %v87
    %1375 = vmatpush.msra.mxu0 %v86
    %1376 = vmatpush.msra.mxu0 %v85
    %1377 = vmatmul.f32.gmra.mxu0 %v1350
    %v1378 = vpop.f32.mrf.mxu0
    %v1379 = vadd.f32 0.0, %v1378
    %1380 = vmatmul.f32.gmra.mxu0 %v1353
    %v1381 = vpop.f32.mrf.mxu0
    %v1382 = vadd.f32 0.0, %v1381
    %1383 = vmatmul.f32.gmra.mxu0 %v1356
    %v1384 = vpop.f32.mrf.mxu0
    %v1385 = vadd.f32 0.0, %v1384
    %1386 = vmatmul.f32.gmra.mxu0 %v1359
    %v1387 = vpop.f32.mrf.mxu0
    %v1388 = vadd.f32 0.0, %v1387
    %1389 = vdwg.mxu0
    %v1390 = vmax.f32 %v1338, %v1379
    %v1391 = vmax.f32 %v1341, %v1382
    %v1392 = vmax.f32 %v1344, %v1385
    %v1393 = vmax.f32 %v1347, %v1388
    %v1394 = vadd.f32 %v1390, %v652
    %v1395 = vadd.f32 %v1391, %v652
    %v1396 = vadd.f32 %v1392, %v652
    %v1397 = vadd.f32 %v1393, %v652
    %v1398 = vmax.f32 %v1394, 0.0
    %v1399 = vmax.f32 %v1395, 0.0
    %v1400 = vmax.f32 %v1396, 0.0
    %v1401 = vmax.f32 %v1397, 0.0
    %1402 = vst.msk [vmem:[#allocation4 + $0x1] sm:$0x1] %vm662, %v1398
    %v1404 = vrot.slane %v1398, 7
    %v1405 = vrot.slane %v1404, 2
    %1406 = vrot.lane.b32.xlu0 %v1405, 32
    %v1407 = vpop.permute.xlu0 %1406
    %1409 = vst.msk [vmem:[#allocation4 + $0x1] sm:$0x1] %vm670, %v1407
    %1410 = vst.sshfl [vmem:[#allocation1] sm:$0xff pattern:$0x73625140] %v1398
    %s1411 = scalar_lea.vmem [#allocation1], 1
    %v1412 = vld [vmem:[%s1411] ss:$4 sm:$0xff]
    %1413 = vrot.lane.b32.xlu0 %v1412, 64
    %v1414 = vpop.permute.xlu0 %1413
    %1416 = vst.msk [vmem:[#allocation4 + $0x1] sm:$0x1] %vm678, %v1414
    %1417 = vst.sshfl [vmem:[#allocation1] sm:$0xff pattern:$0x73625140] %v1398
    %s1418 = scalar_lea.vmem [#allocation1], 1
    %v1419 = vld [vmem:[%s1418] ss:$4 sm:$0xff]
    %v1420 = vrot.slane %v1419, 7
    %v1421 = vrot.slane %v1420, 2
    %1422 = vrot.lane.b32.xlu0 %v1421, 96
    %v1423 = vpop.permute.xlu0 %1422
    %1425 = vst.msk [vmem:[#allocation4 + $0x1] sm:$0x1] %vm688, %v1423
    %1426 = vst.sshfl [vmem:[#allocation1] sm:$0xff pattern:$0x73625140] %v1398
    %s1427 = scalar_lea.vmem [#allocation1], 2
    %v1428 = vld [vmem:[%s1427] ss:$4 sm:$0xff]
    %1430 = vst.msk [vmem:[#allocation4 + $0x3] sm:$0x1] %vm662, %v1428
    %1431 = vst.sshfl [vmem:[#allocation1] sm:$0xff pattern:$0x73625140] %v1398
    %s1432 = scalar_lea.vmem [#allocation1], 2
    %v1433 = vld [vmem:[%s1432] ss:$4 sm:$0xff]
    %v1434 = vrot.slane %v1433, 7
    %v1435 = vrot.slane %v1434, 2
    %1436 = vrot.lane.b32.xlu0 %v1435, 32
    %v1437 = vpop.permute.xlu0 %1436
    %1439 = vst.msk [vmem:[#allocation4 + $0x3] sm:$0x1] %vm670, %v1437
    %1440 = vst.sshfl [vmem:[#allocation1] sm:$0xff pattern:$0x73625140] %v1398
    %s1441 = scalar_lea.vmem [#allocation1], 3
    %v1442 = vld [vmem:[%s1441] ss:$4 sm:$0xff]
    %1443 = vrot.lane.b32.xlu0 %v1442, 64
    %v1444 = vpop.permute.xlu0 %1443
    %1446 = vst.msk [vmem:[#allocation4 + $0x3] sm:$0x1] %vm678, %v1444
    %1447 = vst.sshfl [vmem:[#allocation1] sm:$0xff pattern:$0x73625140] %v1398
    %s1448 = scalar_lea.vmem [#allocation1], 3
    %v1449 = vld [vmem:[%s1448] ss:$4 sm:$0xff]
    %v1450 = vrot.slane %v1449, 7
    %v1451 = vrot.slane %v1450, 2
    %1452 = vrot.lane.b32.xlu0 %v1451, 96
    %v1453 = vpop.permute.xlu0 %1452
    %1455 = vst.msk [vmem:[#allocation4 + $0x3] sm:$0x1] %vm688, %v1453
    %1456 = vst.msk [vmem:[#allocation4 + $0x5] sm:$0x1] %vm662, %v1399
    %v1458 = vrot.slane %v1399, 7
    %v1459 = vrot.slane %v1458, 2
    %1460 = vrot.lane.b32.xlu0 %v1459, 32
    %v1461 = vpop.permute.xlu0 %1460
    %1463 = vst.msk [vmem:[#allocation4 + $0x5] sm:$0x1] %vm670, %v1461
    %1464 = vst.sshfl [vmem:[#allocation1] sm:$0xff pattern:$0x73625140] %v1399
    %s1465 = scalar_lea.vmem [#allocation1], 1
    %v1466 = vld [vmem:[%s1465] ss:$4 sm:$0xff]
    %1467 = vrot.lane.b32.xlu0 %v1466, 64
    %v1468 = vpop.permute.xlu0 %1467
    %1470 = vst.msk [vmem:[#allocation4 + $0x5] sm:$0x1] %vm678, %v1468
    %1471 = vst.sshfl [vmem:[#allocation1] sm:$0xff pattern:$0x73625140] %v1399
    %s1472 = scalar_lea.vmem [#allocation1], 1
    %v1473 = vld [vmem:[%s1472] ss:$4 sm:$0xff]
    %v1474 = vrot.slane %v1473, 7
    %v1475 = vrot.slane %v1474, 2
    %1476 = vrot.lane.b32.xlu0 %v1475, 96
    %v1477 = vpop.permute.xlu0 %1476
    %1479 = vst.msk [vmem:[#allocation4 + $0x5] sm:$0x1] %vm688, %v1477
    %1480 = vst.sshfl [vmem:[#allocation1] sm:$0xff pattern:$0x73625140] %v1399
    %s1481 = scalar_lea.vmem [#allocation1], 2
    %v1482 = vld [vmem:[%s1481] ss:$4 sm:$0xff]
    %1484 = vst.msk [vmem:[#allocation4 + $0x7] sm:$0x1] %vm662, %v1482
    %1485 = vst.sshfl [vmem:[#allocation1] sm:$0xff pattern:$0x73625140] %v1399
    %s1486 = scalar_lea.vmem [#allocation1], 2
    %v1487 = vld [vmem:[%s1486] ss:$4 sm:$0xff]
    %v1488 = vrot.slane %v1487, 7
    %v1489 = vrot.slane %v1488, 2
    %1490 = vrot.lane.b32.xlu0 %v1489, 32
    %v1491 = vpop.permute.xlu0 %1490
    %1493 = vst.msk [vmem:[#allocation4 + $0x7] sm:$0x1] %vm670, %v1491
    %1494 = vst.sshfl [vmem:[#allocation1] sm:$0xff pattern:$0x73625140] %v1399
    %s1495 = scalar_lea.vmem [#allocation1], 3
    %v1496 = vld [vmem:[%s1495] ss:$4 sm:$0xff]
    %1497 = vrot.lane.b32.xlu0 %v1496, 64
    %v1498 = vpop.permute.xlu0 %1497
    %1500 = vst.msk [vmem:[#allocation4 + $0x7] sm:$0x1] %vm678, %v1498
    %1501 = vst.sshfl [vmem:[#allocation1] sm:$0xff pattern:$0x73625140] %v1399
    %s1502 = scalar_lea.vmem [#allocation1], 3
    %v1503 = vld [vmem:[%s1502] ss:$4 sm:$0xff]
    %v1504 = vrot.slane %v1503, 7
    %v1505 = vrot.slane %v1504, 2
    %1506 = vrot.lane.b32.xlu0 %v1505, 96
    %v1507 = vpop.permute.xlu0 %1506
    %1509 = vst.msk [vmem:[#allocation4 + $0x7] sm:$0x1] %vm688, %v1507
    %1510 = vst.msk [vmem:[#allocation4 + $0x9] sm:$0x1] %vm662, %v1400
    %v1512 = vrot.slane %v1400, 7
    %v1513 = vrot.slane %v1512, 2
    %1514 = vrot.lane.b32.xlu0 %v1513, 32
    %v1515 = vpop.permute.xlu0 %1514
    %1517 = vst.msk [vmem:[#allocation4 + $0x9] sm:$0x1] %vm670, %v1515
    %1518 = vst.sshfl [vmem:[#allocation1] sm:$0xff pattern:$0x73625140] %v1400
    %s1519 = scalar_lea.vmem [#allocation1], 1
    %v1520 = vld [vmem:[%s1519] ss:$4 sm:$0xff]
    %1521 = vrot.lane.b32.xlu0 %v1520, 64
    %v1522 = vpop.permute.xlu0 %1521
    %1524 = vst.msk [vmem:[#allocation4 + $0x9] sm:$0x1] %vm678, %v1522
    %1525 = vst.sshfl [vmem:[#allocation1] sm:$0xff pattern:$0x73625140] %v1400
    %s1526 = scalar_lea.vmem [#allocation1], 1
    %v1527 = vld [vmem:[%s1526] ss:$4 sm:$0xff]
    %v1528 = vrot.slane %v1527, 7
    %v1529 = vrot.slane %v1528, 2
    %1530 = vrot.lane.b32.xlu0 %v1529, 96
    %v1531 = vpop.permute.xlu0 %1530
    %1533 = vst.msk [vmem:[#allocation4 + $0x9] sm:$0x1] %vm688, %v1531
    %1534 = vst.sshfl [vmem:[#allocation1] sm:$0xff pattern:$0x73625140] %v1400
    %s1535 = scalar_lea.vmem [#allocation1], 2
    %v1536 = vld [vmem:[%s1535] ss:$4 sm:$0xff]
    %1538 = vst.msk [vmem:[#allocation4 + $0xb] sm:$0x1] %vm662, %v1536
    %1539 = vst.sshfl [vmem:[#allocation1] sm:$0xff pattern:$0x73625140] %v1400
    %s1540 = scalar_lea.vmem [#allocation1], 2
    %v1541 = vld [vmem:[%s1540] ss:$4 sm:$0xff]
    %v1542 = vrot.slane %v1541, 7
    %v1543 = vrot.slane %v1542, 2
    %1544 = vrot.lane.b32.xlu0 %v1543, 32
    %v1545 = vpop.permute.xlu0 %1544
    %1547 = vst.msk [vmem:[#allocation4 + $0xb] sm:$0x1] %vm670, %v1545
    %1548 = vst.sshfl [vmem:[#allocation1] sm:$0xff pattern:$0x73625140] %v1400
    %s1549 = scalar_lea.vmem [#allocation1], 3
    %v1550 = vld [vmem:[%s1549] ss:$4 sm:$0xff]
    %1551 = vrot.lane.b32.xlu0 %v1550, 64
    %v1552 = vpop.permute.xlu0 %1551
    %1554 = vst.msk [vmem:[#allocation4 + $0xb] sm:$0x1] %vm678, %v1552
    %1555 = vst.sshfl [vmem:[#allocation1] sm:$0xff pattern:$0x73625140] %v1400
    %s1556 = scalar_lea.vmem [#allocation1], 3
    %v1557 = vld [vmem:[%s1556] ss:$4 sm:$0xff]
    %v1558 = vrot.slane %v1557, 7
    %v1559 = vrot.slane %v1558, 2
    %1560 = vrot.lane.b32.xlu0 %v1559, 96
    %v1561 = vpop.permute.xlu0 %1560
    %1563 = vst.msk [vmem:[#allocation4 + $0xb] sm:$0x1] %vm688, %v1561
    %1564 = vst.msk [vmem:[#allocation4 + $0xd] sm:$0x1] %vm662, %v1401
    %v1566 = vrot.slane %v1401, 7
    %v1567 = vrot.slane %v1566, 2
    %1568 = vrot.lane.b32.xlu0 %v1567, 32
    %v1569 = vpop.permute.xlu0 %1568
    %1571 = vst.msk [vmem:[#allocation4 + $0xd] sm:$0x1] %vm670, %v1569
    %1572 = vst.sshfl [vmem:[#allocation1] sm:$0xff pattern:$0x73625140] %v1401
    %s1573 = scalar_lea.vmem [#allocation1], 1
    %v1574 = vld [vmem:[%s1573] ss:$4 sm:$0xff]
    %1575 = vrot.lane.b32.xlu0 %v1574, 64
    %v1576 = vpop.permute.xlu0 %1575
    %1578 = vst.msk [vmem:[#allocation4 + $0xd] sm:$0x1] %vm678, %v1576
    %1579 = vst.sshfl [vmem:[#allocation1] sm:$0xff pattern:$0x73625140] %v1401
    %s1580 = scalar_lea.vmem [#allocation1], 1
    %v1581 = vld [vmem:[%s1580] ss:$4 sm:$0xff]
    %v1582 = vrot.slane %v1581, 7
    %v1583 = vrot.slane %v1582, 2
    %1584 = vrot.lane.b32.xlu0 %v1583, 96
    %v1585 = vpop.permute.xlu0 %1584
    %1587 = vst.msk [vmem:[#allocation4 + $0xd] sm:$0x1] %vm688, %v1585
    %1588 = vst.sshfl [vmem:[#allocation1] sm:$0xff pattern:$0x73625140] %v1401
    %s1589 = scalar_lea.vmem [#allocation1], 2
    %v1590 = vld [vmem:[%s1589] ss:$4 sm:$0xff]
    %1592 = vst.msk [vmem:[#allocation4 + $0xf] sm:$0x1] %vm662, %v1590
    %1593 = vst.sshfl [vmem:[#allocation1] sm:$0xff pattern:$0x73625140] %v1401
    %s1594 = scalar_lea.vmem [#allocation1], 2
    %v1595 = vld [vmem:[%s1594] ss:$4 sm:$0xff]
    %v1596 = vrot.slane %v1595, 7
    %v1597 = vrot.slane %v1596, 2
    %1598 = vrot.lane.b32.xlu0 %v1597, 32
    %v1599 = vpop.permute.xlu0 %1598
    %1601 = vst.msk [vmem:[#allocation4 + $0xf] sm:$0x1] %vm670, %v1599
    %1602 = vst.sshfl [vmem:[#allocation1] sm:$0xff pattern:$0x73625140] %v1401
    %s1603 = scalar_lea.vmem [#allocation1], 3
    %v1604 = vld [vmem:[%s1603] ss:$4 sm:$0xff]
    %1605 = vrot.lane.b32.xlu0 %v1604, 64
    %v1606 = vpop.permute.xlu0 %1605
    %1608 = vst.msk [vmem:[#allocation4 + $0xf] sm:$0x1] %vm678, %v1606
    %v1609 = vld [vmem:[#allocation4] sm:$0xff]
    %v1610 = vld [vmem:[#allocation4 + $0x8] sm:$0xff]
    %v1611 = vld [vmem:[#allocation5] sm:$0xff]
    %v1612 = vld [vmem:[#allocation5 + $0x8] sm:$0xff]
    %v1613 = vld [vmem:[#allocation5 + $0x10] sm:$0xff]
    %v1614 = vld [vmem:[#allocation5 + $0x18] sm:$0xff]
    %v1615 = vld [vmem:[#allocation5 + $0x20] sm:$0xff]
    %v1616 = vld [vmem:[#allocation5 + $0x28] sm:$0xff]
    %v1617 = vld [vmem:[#allocation5 + $0x30] sm:$0xff]
    %v1618 = vld [vmem:[#allocation5 + $0x38] sm:$0xff]
    %v1619 = vld [vmem:[#allocation5 + $0x40] sm:$0xff]
    %v1620 = vld [vmem:[#allocation5 + $0x48] sm:$0xff]
    %v1621 = vld [vmem:[#allocation5 + $0x50] sm:$0xff]
    %v1622 = vld [vmem:[#allocation5 + $0x58] sm:$0xff]
    %v1623 = vld [vmem:[#allocation5 + $0x60] sm:$0xff]
    %v1624 = vld [vmem:[#allocation5 + $0x68] sm:$0xff]
    %v1625 = vld [vmem:[#allocation5 + $0x70] sm:$0xff]
    %v1626 = vld [vmem:[#allocation5 + $0x78] sm:$0xff]
    %v1627 = vld [vmem:[#allocation5 + $0x80] sm:$0xff]
    %v1628 = vld [vmem:[#allocation5 + $0x88] sm:$0xff]
    %v1629 = vld [vmem:[#allocation5 + $0x90] sm:$0xff]
    %v1630 = vld [vmem:[#allocation5 + $0x98] sm:$0xff]
    %v1631 = vld [vmem:[#allocation5 + $0xa0] sm:$0xff]
    %v1632 = vld [vmem:[#allocation5 + $0xa8] sm:$0xff]
    %v1633 = vld [vmem:[#allocation5 + $0xb0] sm:$0xff]
    %v1634 = vld [vmem:[#allocation5 + $0xb8] sm:$0xff]
    %v1635 = vld [vmem:[#allocation5 + $0xc0] sm:$0xff]
    %v1636 = vld [vmem:[#allocation5 + $0xc8] sm:$0xff]
    %v1637 = vld [vmem:[#allocation5 + $0xd0] sm:$0xff]
    %v1638 = vld [vmem:[#allocation5 + $0xd8] sm:$0xff]
    %v1639 = vld [vmem:[#allocation5 + $0xe0] sm:$0xff]
    %v1640 = vld [vmem:[#allocation5 + $0xe8] sm:$0xff]
    %v1641 = vld [vmem:[#allocation5 + $0xf0] sm:$0xff]
    %v1642 = vld [vmem:[#allocation5 + $0xf8] sm:$0xff]
    %v1643 = vld [vmem:[#allocation5 + $0x100] sm:$0xff]
    %v1644 = vld [vmem:[#allocation5 + $0x108] sm:$0xff]
    %v1645 = vld [vmem:[#allocation5 + $0x110] sm:$0xff]
    %v1646 = vld [vmem:[#allocation5 + $0x118] sm:$0xff]
    %v1647 = vld [vmem:[#allocation5 + $0x120] sm:$0xff]
    %v1648 = vld [vmem:[#allocation5 + $0x128] sm:$0xff]
    %v1649 = vld [vmem:[#allocation5 + $0x130] sm:$0xff]
    %v1650 = vld [vmem:[#allocation5 + $0x138] sm:$0xff]
    %v1651 = vld [vmem:[#allocation5 + $0x140] sm:$0xff]
    %v1652 = vld [vmem:[#allocation5 + $0x148] sm:$0xff]
    %v1653 = vld [vmem:[#allocation5 + $0x150] sm:$0xff]
    %v1654 = vld [vmem:[#allocation5 + $0x158] sm:$0xff]
    %v1655 = vld [vmem:[#allocation5 + $0x160] sm:$0xff]
    %v1656 = vld [vmem:[#allocation5 + $0x168] sm:$0xff]
    %v1657 = vld [vmem:[#allocation5 + $0x170] sm:$0xff]
    %v1658 = vld [vmem:[#allocation5 + $0x178] sm:$0xff]
    %v1659 = vld [vmem:[#allocation5 + $0x180] sm:$0xff]
    %v1660 = vld [vmem:[#allocation5 + $0x188] sm:$0xff]
    %v1661 = vld [vmem:[#allocation5 + $0x190] sm:$0xff]
    %v1662 = vld [vmem:[#allocation5 + $0x198] sm:$0xff]
    %v1663 = vld [vmem:[#allocation5 + $0x1a0] sm:$0xff]
    %v1664 = vld [vmem:[#allocation5 + $0x1a8] sm:$0xff]
    %v1665 = vld [vmem:[#allocation5 + $0x1b0] sm:$0xff]
    %v1666 = vld [vmem:[#allocation5 + $0x1b8] sm:$0xff]
    %v1667 = vld [vmem:[#allocation5 + $0x1c0] sm:$0xff]
    %v1668 = vld [vmem:[#allocation5 + $0x1c8] sm:$0xff]
    %v1669 = vld [vmem:[#allocation5 + $0x1d0] sm:$0xff]
    %v1670 = vld [vmem:[#allocation5 + $0x1d8] sm:$0xff]
    %v1671 = vld [vmem:[#allocation5 + $0x1e0] sm:$0xff]
    %v1672 = vld [vmem:[#allocation5 + $0x1e8] sm:$0xff]
    %v1673 = vld [vmem:[#allocation5 + $0x1f0] sm:$0xff]
    %v1674 = vld [vmem:[#allocation5 + $0x1f8] sm:$0xff]
    %v1675 = vld [vmem:[#allocation5 + $0x200] sm:$0xff]
    %v1676 = vld [vmem:[#allocation5 + $0x208] sm:$0xff]
    %v1677 = vld [vmem:[#allocation5 + $0x210] sm:$0xff]
    %v1678 = vld [vmem:[#allocation5 + $0x218] sm:$0xff]
    %v1679 = vld [vmem:[#allocation5 + $0x220] sm:$0xff]
    %v1680 = vld [vmem:[#allocation5 + $0x228] sm:$0xff]
    %v1681 = vld [vmem:[#allocation5 + $0x230] sm:$0xff]
    %v1682 = vld [vmem:[#allocation5 + $0x238] sm:$0xff]
    %v1683 = vld [vmem:[#allocation5 + $0x240] sm:$0xff]
    %v1684 = vld [vmem:[#allocation5 + $0x248] sm:$0xff]
    %v1685 = vld [vmem:[#allocation5 + $0x250] sm:$0xff]
    %v1686 = vld [vmem:[#allocation5 + $0x258] sm:$0xff]
    %v1687 = vld [vmem:[#allocation5 + $0x260] sm:$0xff]
    %v1688 = vld [vmem:[#allocation5 + $0x268] sm:$0xff]
    %v1689 = vld [vmem:[#allocation5 + $0x270] sm:$0xff]
    %v1690 = vld [vmem:[#allocation5 + $0x278] sm:$0xff]
    %v1691 = vld [vmem:[#allocation5 + $0x280] sm:$0xff]
    %v1692 = vld [vmem:[#allocation5 + $0x288] sm:$0xff]
    %v1693 = vld [vmem:[#allocation5 + $0x290] sm:$0xff]
    %v1694 = vld [vmem:[#allocation5 + $0x298] sm:$0xff]
    %v1695 = vld [vmem:[#allocation5 + $0x2a0] sm:$0xff]
    %v1696 = vld [vmem:[#allocation5 + $0x2a8] sm:$0xff]
    %v1697 = vld [vmem:[#allocation5 + $0x2b0] sm:$0xff]
    %v1698 = vld [vmem:[#allocation5 + $0x2b8] sm:$0xff]
    %v1699 = vld [vmem:[#allocation5 + $0x2c0] sm:$0xff]
    %v1700 = vld [vmem:[#allocation5 + $0x2c8] sm:$0xff]
    %v1701 = vld [vmem:[#allocation5 + $0x2d0] sm:$0xff]
    %v1702 = vld [vmem:[#allocation5 + $0x2d8] sm:$0xff]
    %v1703 = vld [vmem:[#allocation5 + $0x2e0] sm:$0xff]
    %v1704 = vld [vmem:[#allocation5 + $0x2e8] sm:$0xff]
    %v1705 = vld [vmem:[#allocation5 + $0x2f0] sm:$0xff]
    %v1706 = vld [vmem:[#allocation5 + $0x2f8] sm:$0xff]
    %v1707 = vld [vmem:[#allocation5 + $0x300] sm:$0xff]
    %v1708 = vld [vmem:[#allocation5 + $0x308] sm:$0xff]
    %v1709 = vld [vmem:[#allocation5 + $0x310] sm:$0xff]
    %v1710 = vld [vmem:[#allocation5 + $0x318] sm:$0xff]
    %v1711 = vld [vmem:[#allocation5 + $0x320] sm:$0xff]
    %v1712 = vld [vmem:[#allocation5 + $0x328] sm:$0xff]
    %v1713 = vld [vmem:[#allocation5 + $0x330] sm:$0xff]
    %v1714 = vld [vmem:[#allocation5 + $0x338] sm:$0xff]
    %v1715 = vld [vmem:[#allocation5 + $0x340] sm:$0xff]
    %v1716 = vld [vmem:[#allocation5 + $0x348] sm:$0xff]
    %v1717 = vld [vmem:[#allocation5 + $0x350] sm:$0xff]
    %v1718 = vld [vmem:[#allocation5 + $0x358] sm:$0xff]
    %v1719 = vld [vmem:[#allocation5 + $0x360] sm:$0xff]
    %v1720 = vld [vmem:[#allocation5 + $0x368] sm:$0xff]
    %v1721 = vld [vmem:[#allocation5 + $0x370] sm:$0xff]
    %v1722 = vld [vmem:[#allocation5 + $0x378] sm:$0xff]
    %v1723 = vld [vmem:[#allocation5 + $0x380] sm:$0xff]
    %v1724 = vld [vmem:[#allocation5 + $0x388] sm:$0xff]
    %v1725 = vld [vmem:[#allocation5 + $0x390] sm:$0xff]
    %v1726 = vld [vmem:[#allocation5 + $0x398] sm:$0xff]
    %v1727 = vld [vmem:[#allocation5 + $0x3a0] sm:$0xff]
    %v1728 = vld [vmem:[#allocation5 + $0x3a8] sm:$0xff]
    %v1729 = vld [vmem:[#allocation5 + $0x3b0] sm:$0xff]
    %v1730 = vld [vmem:[#allocation5 + $0x3b8] sm:$0xff]
    %v1731 = vld [vmem:[#allocation5 + $0x3c0] sm:$0xff]
    %v1732 = vld [vmem:[#allocation5 + $0x3c8] sm:$0xff]
    %v1733 = vld [vmem:[#allocation5 + $0x3d0] sm:$0xff]
    %v1734 = vld [vmem:[#allocation5 + $0x3d8] sm:$0xff]
    %v1735 = vld [vmem:[%s6] sm:$0x1]
    %v1737 = vperm.slane %v1735, 0
    %1741 = vst [vmem:[#allocation1] ss:$4 sm:$0xff] %v1609
    %s1742 = scalar_lea.vmem [#allocation1], 32
    %1743 = vst [vmem:[%s1742] ss:$4 sm:$0xff] %v1610
    %v1744 = vld.sshfl [vmem:[#allocation1] sm:$0xff pattern:$0x73625140]
    %v1745 = vld.sshfl [vmem:[#allocation1 + $0x8] sm:$0xff pattern:$0x73625140]
    %v1746 = vld.sshfl [vmem:[#allocation1 + $0x10] sm:$0xff pattern:$0x73625140]
    %v1747 = vld.sshfl [vmem:[#allocation1 + $0x18] sm:$0xff pattern:$0x73625140]
    %v1748 = vld.sshfl [vmem:[#allocation1 + $0x20] sm:$0xff pattern:$0x73625140]
    %v1749 = vld.sshfl [vmem:[#allocation1 + $0x28] sm:$0xff pattern:$0x73625140]
    %v1750 = vld.sshfl [vmem:[#allocation1 + $0x30] sm:$0xff pattern:$0x73625140]
    %v1751 = vld.sshfl [vmem:[#allocation1 + $0x38] sm:$0xff pattern:$0x73625140]
    %vm1759 = vcmask 785408
    %v1760 = vsel %vm1759, %v1751, 0
    %1762 = vmatpush.msra.mxu0 %v1626
    %1763 = vmatpush.msra.mxu0 %v1625
    %1764 = vmatpush.msra.mxu0 %v1624
    %1765 = vmatpush.msra.mxu0 %v1623
    %1766 = vmatpush.msra.mxu0 %v1622
    %1767 = vmatpush.msra.mxu0 %v1621
    %1768 = vmatpush.msra.mxu0 %v1620
    %1769 = vmatpush.msra.mxu0 %v1619
    %1770 = vmatpush.msra.mxu0 %v1618
    %1771 = vmatpush.msra.mxu0 %v1617
    %1772 = vmatpush.msra.mxu0 %v1616
    %1773 = vmatpush.msra.mxu0 %v1615
    %1774 = vmatpush.msra.mxu0 %v1614
    %1775 = vmatpush.msra.mxu0 %v1613
    %1776 = vmatpush.msra.mxu0 %v1612
    %1777 = vmatpush.msra.mxu0 %v1611
    %1778 = vmatmul.f32.gmra.mxu0 %v1744
    %v1779 = vpop.f32.mrf.mxu0
    %v1780 = vadd.f32 %v1737, %v1779
    %1781 = vdwg.mxu0
    %1782 = vmatpush.msra.mxu0 %v1642
    %1783 = vmatpush.msra.mxu0 %v1641
    %1784 = vmatpush.msra.mxu0 %v1640
    %1785 = vmatpush.msra.mxu0 %v1639
    %1786 = vmatpush.msra.mxu0 %v1638
    %1787 = vmatpush.msra.mxu0 %v1637
    %1788 = vmatpush.msra.mxu0 %v1636
    %1789 = vmatpush.msra.mxu0 %v1635
    %1790 = vmatpush.msra.mxu0 %v1634
    %1791 = vmatpush.msra.mxu0 %v1633
    %1792 = vmatpush.msra.mxu0 %v1632
    %1793 = vmatpush.msra.mxu0 %v1631
    %1794 = vmatpush.msra.mxu0 %v1630
    %1795 = vmatpush.msra.mxu0 %v1629
    %1796 = vmatpush.msra.mxu0 %v1628
    %1797 = vmatpush.msra.mxu0 %v1627
    %1798 = vmatmul.f32.gmra.mxu0 %v1745
    %v1799 = vpop.f32.mrf.mxu0
    %v1800 = vadd.f32 %v1780, %v1799
    %1801 = vdwg.mxu0
    %1802 = vmatpush.msra.mxu0 %v1658
    %1803 = vmatpush.msra.mxu0 %v1657
    %1804 = vmatpush.msra.mxu0 %v1656
    %1805 = vmatpush.msra.mxu0 %v1655
    %1806 = vmatpush.msra.mxu0 %v1654
    %1807 = vmatpush.msra.mxu0 %v1653
    %1808 = vmatpush.msra.mxu0 %v1652
    %1809 = vmatpush.msra.mxu0 %v1651
    %1810 = vmatpush.msra.mxu0 %v1650
    %1811 = vmatpush.msra.mxu0 %v1649
    %1812 = vmatpush.msra.mxu0 %v1648
    %1813 = vmatpush.msra.mxu0 %v1647
    %1814 = vmatpush.msra.mxu0 %v1646
    %1815 = vmatpush.msra.mxu0 %v1645
    %1816 = vmatpush.msra.mxu0 %v1644
    %1817 = vmatpush.msra.mxu0 %v1643
    %1818 = vmatmul.f32.gmra.mxu0 %v1746
    %v1819 = vpop.f32.mrf.mxu0
    %v1820 = vadd.f32 %v1800, %v1819
    %1821 = vdwg.mxu0
    %1822 = vmatpush.msra.mxu0 %v1674
    %1823 = vmatpush.msra.mxu0 %v1673
    %1824 = vmatpush.msra.mxu0 %v1672
    %1825 = vmatpush.msra.mxu0 %v1671
    %1826 = vmatpush.msra.mxu0 %v1670
    %1827 = vmatpush.msra.mxu0 %v1669
    %1828 = vmatpush.msra.mxu0 %v1668
    %1829 = vmatpush.msra.mxu0 %v1667
    %1830 = vmatpush.msra.mxu0 %v1666
    %1831 = vmatpush.msra.mxu0 %v1665
    %1832 = vmatpush.msra.mxu0 %v1664
    %1833 = vmatpush.msra.mxu0 %v1663
    %1834 = vmatpush.msra.mxu0 %v1662
    %1835 = vmatpush.msra.mxu0 %v1661
    %1836 = vmatpush.msra.mxu0 %v1660
    %1837 = vmatpush.msra.mxu0 %v1659
    %1838 = vmatmul.f32.gmra.mxu0 %v1747
    %v1839 = vpop.f32.mrf.mxu0
    %v1840 = vadd.f32 %v1820, %v1839
    %1841 = vdwg.mxu0
    %1842 = vmatpush.msra.mxu0 %v1690
    %1843 = vmatpush.msra.mxu0 %v1689
    %1844 = vmatpush.msra.mxu0 %v1688
    %1845 = vmatpush.msra.mxu0 %v1687
    %1846 = vmatpush.msra.mxu0 %v1686
    %1847 = vmatpush.msra.mxu0 %v1685
    %1848 = vmatpush.msra.mxu0 %v1684
    %1849 = vmatpush.msra.mxu0 %v1683
    %1850 = vmatpush.msra.mxu0 %v1682
    %1851 = vmatpush.msra.mxu0 %v1681
    %1852 = vmatpush.msra.mxu0 %v1680
    %1853 = vmatpush.msra.mxu0 %v1679
    %1854 = vmatpush.msra.mxu0 %v1678
    %1855 = vmatpush.msra.mxu0 %v1677
    %1856 = vmatpush.msra.mxu0 %v1676
    %1857 = vmatpush.msra.mxu0 %v1675
    %1858 = vmatmul.f32.gmra.mxu0 %v1748
    %v1859 = vpop.f32.mrf.mxu0
    %v1860 = vadd.f32 %v1840, %v1859
    %1861 = vdwg.mxu0
    %1862 = vmatpush.msra.mxu0 %v1706
    %1863 = vmatpush.msra.mxu0 %v1705
    %1864 = vmatpush.msra.mxu0 %v1704
    %1865 = vmatpush.msra.mxu0 %v1703
    %1866 = vmatpush.msra.mxu0 %v1702
    %1867 = vmatpush.msra.mxu0 %v1701
    %1868 = vmatpush.msra.mxu0 %v1700
    %1869 = vmatpush.msra.mxu0 %v1699
    %1870 = vmatpush.msra.mxu0 %v1698
    %1871 = vmatpush.msra.mxu0 %v1697
    %1872 = vmatpush.msra.mxu0 %v1696
    %1873 = vmatpush.msra.mxu0 %v1695
    %1874 = vmatpush.msra.mxu0 %v1694
    %1875 = vmatpush.msra.mxu0 %v1693
    %1876 = vmatpush.msra.mxu0 %v1692
    %1877 = vmatpush.msra.mxu0 %v1691
    %1878 = vmatmul.f32.gmra.mxu0 %v1749
    %v1879 = vpop.f32.mrf.mxu0
    %v1880 = vadd.f32 %v1860, %v1879
    %1881 = vdwg.mxu0
    %1882 = vmatpush.msra.mxu0 %v1722
    %1883 = vmatpush.msra.mxu0 %v1721
    %1884 = vmatpush.msra.mxu0 %v1720
    %1885 = vmatpush.msra.mxu0 %v1719
    %1886 = vmatpush.msra.mxu0 %v1718
    %1887 = vmatpush.msra.mxu0 %v1717
    %1888 = vmatpush.msra.mxu0 %v1716
    %1889 = vmatpush.msra.mxu0 %v1715
    %1890 = vmatpush.msra.mxu0 %v1714
    %1891 = vmatpush.msra.mxu0 %v1713
    %1892 = vmatpush.msra.mxu0 %v1712
    %1893 = vmatpush.msra.mxu0 %v1711
    %1894 = vmatpush.msra.mxu0 %v1710
    %1895 = vmatpush.msra.mxu0 %v1709
    %1896 = vmatpush.msra.mxu0 %v1708
    %1897 = vmatpush.msra.mxu0 %v1707
    %1898 = vmatmul.f32.gmra.mxu0 %v1750
    %v1899 = vpop.f32.mrf.mxu0
    %v1900 = vadd.f32 %v1880, %v1899
    %1901 = vdwg.mxu0
    %1902 = vmatpush.msra.mxu0 0.0
    %1903 = vmatpush.msra.mxu0 0.0
    %1904 = vmatpush.msra.mxu0 0.0
    %1905 = vmatpush.msra.mxu0 0.0
    %1906 = vmatpush.msra.mxu0 %v1734
    %1907 = vmatpush.msra.mxu0 %v1733
    %1908 = vmatpush.msra.mxu0 %v1732
    %1909 = vmatpush.msra.mxu0 %v1731
    %1910 = vmatpush.msra.mxu0 %v1730
    %1911 = vmatpush.msra.mxu0 %v1729
    %1912 = vmatpush.msra.mxu0 %v1728
    %1913 = vmatpush.msra.mxu0 %v1727
    %1914 = vmatpush.msra.mxu0 %v1726
    %1915 = vmatpush.msra.mxu0 %v1725
    %1916 = vmatpush.msra.mxu0 %v1724
    %1917 = vmatpush.msra.mxu0 %v1723
    %1918 = vmatmul.f32.gmra.mxu0 %v1760
    %v1919 = vpop.f32.mrf.mxu0
    %v1920 = vadd.f32 %v1900, %v1919
    %1921 = vdwg.mxu0
    %v1922 = vmax.f32 %v1920, 0.0
    %v1923 = vld [vmem:[%s7] sm:$0xff]
    %v1924 = vld [vmem:[%s7 + $0x8] sm:$0xff]
    %v1925 = vld [vmem:[%s7 + $0x10] sm:$0xff]
    %v1926 = vld [vmem:[%s7 + $0x18] sm:$0xff]
    %v1927 = vld [vmem:[%s7 + $0x20] sm:$0xff]
    %v1928 = vld [vmem:[%s7 + $0x28] sm:$0xff]
    %v1929 = vld [vmem:[%s7 + $0x30] sm:$0xff]
    %v1930 = vld [vmem:[%s7 + $0x38] sm:$0xff]
    %v1931 = vld [vmem:[%s7 + $0x40] sm:$0xff]
    %v1932 = vld [vmem:[%s7 + $0x48] sm:$0xff]
    %v1933 = vld [vmem:[%s7 + $0x50] sm:$0xff]
    %v1934 = vld [vmem:[%s7 + $0x58] sm:$0xff]
    %v1935 = vld [vmem:[%s7 + $0x60] sm:$0xff]
    %v1936 = vld [vmem:[%s7 + $0x68] sm:$0xff]
    %v1937 = vld [vmem:[%s7 + $0x70] sm:$0xff]
    %v1938 = vld [vmem:[%s7 + $0x78] sm:$0xff]
    %v1939 = vld [vmem:[%s8] sm:$0x1]
    %v1941 = vperm.slane %v1939, 0
    %1943 = vmatpush.msra.mxu0 %v1938
    %1944 = vmatpush.msra.mxu0 %v1937
    %1945 = vmatpush.msra.mxu0 %v1936
    %1946 = vmatpush.msra.mxu0 %v1935
    %1947 = vmatpush.msra.mxu0 %v1934
    %1948 = vmatpush.msra.mxu0 %v1933
    %1949 = vmatpush.msra.mxu0 %v1932
    %1950 = vmatpush.msra.mxu0 %v1931
    %1951 = vmatpush.msra.mxu0 %v1930
    %1952 = vmatpush.msra.mxu0 %v1929
    %1953 = vmatpush.msra.mxu0 %v1928
    %1954 = vmatpush.msra.mxu0 %v1927
    %1955 = vmatpush.msra.mxu0 %v1926
    %1956 = vmatpush.msra.mxu0 %v1925
    %1957 = vmatpush.msra.mxu0 %v1924
    %1958 = vmatpush.msra.mxu0 %v1923
    %1959 = vmatmul.f32.gmra.mxu0 %v1922
    %v1960 = vpop.f32.mrf.mxu0
    %v1961 = vadd.f32 %v1941, %v1960
    %1962 = vdwg.mxu0
    %vm1963 = vcmask 25600
    %1964 = vst.msk [vmem:[#allocation8] sm:$0x3] %vm1963, %v1961
    // Predicated region
    $region42: #{onedcnn_forward.1} parent=1 // pred_check
      _
    $region43: #{onedcnn_forward.1} parent=1 // pred_check_branch
      %1966 = sbr.rel (0) target = $region45
    $region44: #{onedcnn_forward.1} parent=1 // pred_region
      %1968 = vsyncadd [#allocation7], 0
      %s1970 = sshll.u32 [#allocation8], 4
      %s1971 = int_to_ptr.vmem [resolvable:$true] %s1970
      %s1972 = sshll.u32 %s9, 4
      %s1973 = int_to_ptr.hbm [resolvable:$true] %s1972
      %1975 = dma.vmem_to_hbm [thread:$0]  %s1971, 32, %s1973, [#allocation7]
    $region45: #{onedcnn_forward.1} parent=1 // pred_fallthru
      _
    // Predicated region
    $region46: #{onedcnn_forward.1} parent=1 // pred_check
      _
    $region47: #{onedcnn_forward.1} parent=1 // pred_check_branch
      %1977 = sbr.rel (0) target = $region49
    $region48: #{onedcnn_forward.1} parent=1 // pred_region
      %1979 = dma.done [#allocation7], 32
    $region49: #{onedcnn_forward.1} parent=1 // pred_fallthru
      _
    %1980 = vsyncpa [#allocation6], 1
    %1981 = vsyncpa [#allocation7], 1

</llo_original>
